<compile_context>
chip_gen: v5e
topology: v5e:2x2
jax: 0.10.0
libtpu: 0.0.40
codegen_flags: <defaults>
</compile_context>

<pallas_src>
import jax
import jax.numpy as jnp
from jax.experimental import pallas as pl
from jax.experimental.pallas import tpu as pltpu

INPUT_DIM = 2
H0, H1, H2, OUT = 1024, 512, 256, 1
OUT_PAD = 128  # lane-dense padded width of the final layer / output


def _round_up(x, m):
    return ((x + m - 1) // m) * m


def _discriminator_kernel(x_ref,
                          w0_ref, b0_ref,
                          w1_ref, b1_ref,
                          w2_ref, b2_ref,
                          w3_ref, b3_ref,
                          o_ref):
    """One batch tile: layer0 on VPU, layers1-3 on MXU (bf16), final sigmoid."""
    x = x_ref[...]                                     # (tb, 2)  f32
    w0 = w0_ref[...]                                   # (2, 1024) f32

    # Layer 0: K=2 contraction -> two VPU broadcast-FMAs (keeps the MXU free,
    # avoids padding K=2 up to the full 128/256 MXU contraction depth).
    h = x[:, 0:1] * w0[0:1, :] + x[:, 1:2] * w0[1:2, :] + b0_ref[...]

    # Layers 1-3: bf16 operands on the MXU, f32 accumulation, f32 bias add.
    h = jnp.dot(h.astype(jnp.bfloat16), w1_ref[...],
                preferred_element_type=jnp.float32) + b1_ref[...]
    h = jnp.dot(h.astype(jnp.bfloat16), w2_ref[...],
                preferred_element_type=jnp.float32) + b2_ref[...]
    h = jnp.dot(h.astype(jnp.bfloat16), w3_ref[...],
                preferred_element_type=jnp.float32) + b3_ref[...]

    # Sigmoid: exp on the EUP, approximate reciprocal on the EUP -> VALU free.
    o_ref[...] = pl.reciprocal(1.0 + jnp.exp(-h), approx=True)


def discriminator_forward(x, params, *, tile_b=256):
    """x: (B, INPUT_DIM) float32. Returns (B, 1) float32."""
    w0, b0, w1, b1, w2, b2, w3, b3 = params
    B, F = x.shape
    assert F == INPUT_DIM

    # Adapt the batch tile down for tiny batches (min 8 rows for sublane
    # alignment); for large batches keep the full 256-row MXU tile.
    # TODO(synk): for B <= ~64 a plain XLA GEMM path would beat the kernel.
    tile_b = max(8, min(tile_b, _round_up(B, 8)))

    pad = (-B) % tile_b
    if pad:
        x = jnp.pad(x, ((0, pad), (0, 0)))
    Bp = x.shape[0]
    grid = (Bp // tile_b,)

    # bf16 weights for the MXU layers (half the weight DMA); final layer is
    # zero-padded to 128 output lanes so stores are unmasked / lane-dense.
    w1b = w1.astype(jnp.bfloat16)
    w2b = w2.astype(jnp.bfloat16)
    w3p = jnp.pad(w3, ((0, 0), (0, OUT_PAD - OUT))).astype(jnp.bfloat16)
    b3p = jnp.pad(b3, ((0, 0), (0, OUT_PAD - OUT)))

    # Weights / biases are small (< 2 MiB total) -> keep whole tensors resident
    # in VMEM (block == full array, constant index_map); only batch is tiled.
    def full(a):
        return pl.BlockSpec(a.shape, lambda i: (0,) * a.ndim)

    out = pl.pallas_call(
        _discriminator_kernel,
        out_shape=jax.ShapeDtypeStruct((Bp, OUT_PAD), jnp.float32),
        grid_spec=pltpu.PrefetchScalarGridSpec(
            num_scalar_prefetch=0,
            grid=grid,
            in_specs=[
                pl.BlockSpec((tile_b, INPUT_DIM), lambda i: (i, 0)),  # x tile
                full(w0), full(b0),
                full(w1b), full(b1),
                full(w2b), full(b2),
                full(w3p), full(b3p),
            ],
            out_specs=pl.BlockSpec((tile_b, OUT_PAD), lambda i: (i, 0)),
        ),
        compiler_params=pltpu.CompilerParams(
            dimension_semantics=("parallel",),   # shards batch across v7x's 2 TCs
            vmem_limit_bytes=32 * 1024 * 1024,   # safe on v5e/v6e/v7x budgets
        ),
    )(x, w0, b0, w1b, b1, w2b, b2, w3p, b3p)

    return out[:B, :OUT]


def init_params(key):
    """Deterministic init matching nn.Linear's U(-1/sqrt(fan_in), 1/sqrt(fan_in)).

    Weights stored transposed relative to PyTorch: (in_features, out_features).
    Biases stored as (1, out_features) for clean broadcasting in the kernel.
    """
    dims = [(INPUT_DIM, H0), (H0, H1), (H1, H2), (H2, OUT)]
    params = []
    for (fan_in, fan_out) in dims:
        key, kw, kb = jax.random.split(key, 3)
        bound = 1.0 / jnp.sqrt(jnp.float32(fan_in))
        w = jax.random.uniform(kw, (fan_in, fan_out), jnp.float32, -bound, bound)
        b = jax.random.uniform(kb, (1, fan_out), jnp.float32, -bound, bound)
        params += [w, b]
    return tuple(params)


def _reference_forward(x, params):
    w0, b0, w1, b1, w2, b2, w3, b3 = params
    h = x @ w0 + b0
    h = h @ w1 + b1
    h = h @ w2 + b2
    h = h @ w3 + b3
    return jax.nn.sigmoid(h)


if __name__ == "__main__":
    key = jax.random.PRNGKey(0)
    kp, kx1, kx2 = jax.random.split(key, 3)

    params = init_params(kp)

    # Small batch (B=8, input_dim=2) — matches the module's expected input.
    x_small = jax.random.normal(kx1, (8, INPUT_DIM), jnp.float32)
    y_small = jax.block_until_ready(discriminator_forward(x_small, params))
    y_small_ref = _reference_forward(x_small, params)
    assert y_small.shape == (8, 1)
    # bf16 MXU matmuls vs f32 reference -> loosened tolerance (sigmoid output).
    assert jnp.allclose(y_small, y_small_ref, atol=2e-2, rtol=2e-2), \
        "small-batch mismatch vs reference"

    # Non-multiple batch exercising padding + multi-step grid.
    x_big = jax.random.normal(kx2, (300, INPUT_DIM), jnp.float32)
    y_big = jax.block_until_ready(discriminator_forward(x_big, params, tile_b=128))
    y_big_ref = _reference_forward(x_big, params)
    assert y_big.shape == (300, 1)
    assert jnp.allclose(y_big, y_big_ref, atol=2e-2, rtol=2e-2), \
        "large-batch mismatch vs reference"

    print("KERNEL_OK")
</pallas_src>

<mosaic_0001>
module attributes {stable_mosaic.version = 11 : i64} {
  func.func @_discriminator_kernel(%arg0: i32, %arg1: memref<8x2xf32, #tpu.memory_space<vmem>>, %arg2: memref<2x1024xf32, #tpu.memory_space<vmem>>, %arg3: memref<1x1024xf32, #tpu.memory_space<vmem>>, %arg4: memref<1024x512xbf16, #tpu.memory_space<vmem>>, %arg5: memref<1x512xf32, #tpu.memory_space<vmem>>, %arg6: memref<512x256xbf16, #tpu.memory_space<vmem>>, %arg7: memref<1x256xf32, #tpu.memory_space<vmem>>, %arg8: memref<256x128xbf16, #tpu.memory_space<vmem>>, %arg9: memref<1x128xf32, #tpu.memory_space<vmem>>, %arg10: memref<8x128xf32, #tpu.memory_space<vmem>>) attributes {dimension_semantics = [#tpu.dimension_semantics<parallel>], iteration_bounds = array<i64: 1>, scalar_prefetch = 0 : i64, scratch_operands = 0 : i64, tpu.core_type = #tpu.core_type<tc>, window_params = [{transform_indices = @transform_0, window_bounds = array<i64: 8, 2>}, {pipeline_mode = #tpu.pipeline_mode<synchronous>, transform_indices = @transform_1, window_bounds = array<i64: 2, 1024>}, {pipeline_mode = #tpu.pipeline_mode<synchronous>, transform_indices = @transform_2, window_bounds = array<i64: 1, 1024>}, {pipeline_mode = #tpu.pipeline_mode<synchronous>, transform_indices = @transform_3, window_bounds = array<i64: 1024, 512>}, {pipeline_mode = #tpu.pipeline_mode<synchronous>, transform_indices = @transform_4, window_bounds = array<i64: 1, 512>}, {pipeline_mode = #tpu.pipeline_mode<synchronous>, transform_indices = @transform_5, window_bounds = array<i64: 512, 256>}, {pipeline_mode = #tpu.pipeline_mode<synchronous>, transform_indices = @transform_6, window_bounds = array<i64: 1, 256>}, {pipeline_mode = #tpu.pipeline_mode<synchronous>, transform_indices = @transform_7, window_bounds = array<i64: 256, 128>}, {pipeline_mode = #tpu.pipeline_mode<synchronous>, transform_indices = @transform_8, window_bounds = array<i64: 1, 128>}, {transform_indices = @transform_9, window_bounds = array<i64: 8, 128>}]} {
    %c0 = arith.constant 0 : index
    %c0_0 = arith.constant 0 : index
    %0 = vector.load %arg1[%c0, %c0_0] : memref<8x2xf32, #tpu.memory_space<vmem>>, vector<8x2xf32>
    %c0_1 = arith.constant 0 : index
    %c0_2 = arith.constant 0 : index
    %1 = vector.load %arg2[%c0_1, %c0_2] : memref<2x1024xf32, #tpu.memory_space<vmem>>, vector<2x1024xf32>
    %2 = vector.extract_strided_slice %0 {offsets = [0, 0], sizes = [8, 1], strides = [1, 1]} : vector<8x2xf32> to vector<8x1xf32>
    %3 = vector.extract_strided_slice %1 {offsets = [0, 0], sizes = [1, 1024], strides = [1, 1]} : vector<2x1024xf32> to vector<1x1024xf32>
    %4 = vector.broadcast %2 : vector<8x1xf32> to vector<8x1024xf32>
    %5 = vector.broadcast %3 : vector<1x1024xf32> to vector<8x1024xf32>
    %6 = arith.mulf %4, %5 : vector<8x1024xf32>
    %7 = vector.extract_strided_slice %0 {offsets = [0, 1], sizes = [8, 1], strides = [1, 1]} : vector<8x2xf32> to vector<8x1xf32>
    %8 = vector.extract_strided_slice %1 {offsets = [1, 0], sizes = [1, 1024], strides = [1, 1]} : vector<2x1024xf32> to vector<1x1024xf32>
    %9 = vector.broadcast %7 : vector<8x1xf32> to vector<8x1024xf32>
    %10 = vector.broadcast %8 : vector<1x1024xf32> to vector<8x1024xf32>
    %11 = arith.mulf %9, %10 : vector<8x1024xf32>
    %12 = arith.addf %6, %11 : vector<8x1024xf32>
    %c0_3 = arith.constant 0 : index
    %c0_4 = arith.constant 0 : index
    %13 = vector.load %arg3[%c0_3, %c0_4] : memref<1x1024xf32, #tpu.memory_space<vmem>>, vector<1x1024xf32>
    %14 = vector.broadcast %13 : vector<1x1024xf32> to vector<8x1024xf32>
    %15 = arith.addf %12, %14 : vector<8x1024xf32>
    %16 = arith.truncf %15 : vector<8x1024xf32> to vector<8x1024xbf16>
    %c0_5 = arith.constant 0 : index
    %c0_6 = arith.constant 0 : index
    %17 = vector.load %arg4[%c0_5, %c0_6] : memref<1024x512xbf16, #tpu.memory_space<vmem>>, vector<1024x512xbf16>
    %cst = arith.constant dense<0.000000e+00> : vector<8x512xf32>
    %18 = tpu.matmul %16, %17, %cst {dimension_numbers = #tpu.dot_dimension_numbers<[1], [0], [0], [1], [0, 0, 1, 1], [], []>} : vector<8x1024xbf16>, vector<1024x512xbf16>, vector<8x512xf32> -> vector<8x512xf32>
    %c0_7 = arith.constant 0 : index
    %c0_8 = arith.constant 0 : index
    %19 = vector.load %arg5[%c0_7, %c0_8] : memref<1x512xf32, #tpu.memory_space<vmem>>, vector<1x512xf32>
    %20 = vector.broadcast %19 : vector<1x512xf32> to vector<8x512xf32>
    %21 = arith.addf %18, %20 : vector<8x512xf32>
    %22 = arith.truncf %21 : vector<8x512xf32> to vector<8x512xbf16>
    %c0_9 = arith.constant 0 : index
    %c0_10 = arith.constant 0 : index
    %23 = vector.load %arg6[%c0_9, %c0_10] : memref<512x256xbf16, #tpu.memory_space<vmem>>, vector<512x256xbf16>
    %cst_11 = arith.constant dense<0.000000e+00> : vector<8x256xf32>
    %24 = tpu.matmul %22, %23, %cst_11 {dimension_numbers = #tpu.dot_dimension_numbers<[1], [0], [0], [1], [0, 0, 1, 1], [], []>} : vector<8x512xbf16>, vector<512x256xbf16>, vector<8x256xf32> -> vector<8x256xf32>
    %c0_12 = arith.constant 0 : index
    %c0_13 = arith.constant 0 : index
    %25 = vector.load %arg7[%c0_12, %c0_13] : memref<1x256xf32, #tpu.memory_space<vmem>>, vector<1x256xf32>
    %26 = vector.broadcast %25 : vector<1x256xf32> to vector<8x256xf32>
    %27 = arith.addf %24, %26 : vector<8x256xf32>
    %28 = arith.truncf %27 : vector<8x256xf32> to vector<8x256xbf16>
    %c0_14 = arith.constant 0 : index
    %c0_15 = arith.constant 0 : index
    %29 = vector.load %arg8[%c0_14, %c0_15] : memref<256x128xbf16, #tpu.memory_space<vmem>>, vector<256x128xbf16>
    %cst_16 = arith.constant dense<0.000000e+00> : vector<8x128xf32>
    %30 = tpu.matmul %28, %29, %cst_16 {dimension_numbers = #tpu.dot_dimension_numbers<[1], [0], [0], [1], [0, 0, 1, 1], [], []>} : vector<8x256xbf16>, vector<256x128xbf16>, vector<8x128xf32> -> vector<8x128xf32>
    %c0_17 = arith.constant 0 : index
    %c0_18 = arith.constant 0 : index
    %31 = vector.load %arg9[%c0_17, %c0_18] : memref<1x128xf32, #tpu.memory_space<vmem>>, vector<1x128xf32>
    %32 = vector.broadcast %31 : vector<1x128xf32> to vector<8x128xf32>
    %33 = arith.addf %30, %32 : vector<8x128xf32>
    %cst_19 = arith.constant 0.000000e+00 : f32
    %34 = vector.broadcast %cst_19 : f32 to vector<8x128xf32>
    %35 = arith.subf %34, %33 : vector<8x128xf32>
    %36 = math.exp %35 : vector<8x128xf32>
    %cst_20 = arith.constant 1.000000e+00 : f32
    %37 = vector.broadcast %cst_20 : f32 to vector<8x128xf32>
    %38 = arith.addf %37, %36 : vector<8x128xf32>
    %39 = tpu.reciprocal %38 {approx = true} : vector<8x128xf32> -> vector<8x128xf32>
    %c0_21 = arith.constant 0 : index
    %c0_22 = arith.constant 0 : index
    %40 = vector.load %arg10[%c0_21, %c0_22] : memref<8x128xf32, #tpu.memory_space<vmem>>, vector<8x128xf32>
    tpu.vector_store %arg10[%c0_21, %c0_22], %39 {strides = array<i32>} : memref<8x128xf32, #tpu.memory_space<vmem>>, vector<8x128xf32>,
    return
  }
  func.func @transform_0(%arg0: i32) -> (i32, i32) {
    %c0_i32 = arith.constant 0 : i32
    %c0_i32_0 = arith.constant 0 : i32
    return %arg0, %c0_i32 : i32, i32
  }
  func.func @transform_1(%arg0: i32) -> (i32, i32) {
    %c0_i32 = arith.constant 0 : i32
    %c0_i32_0 = arith.constant 0 : i32
    %c0_i32_1 = arith.constant 0 : i32
    return %c0_i32, %c0_i32_0 : i32, i32
  }
  func.func @transform_2(%arg0: i32) -> (i32, i32) {
    %c0_i32 = arith.constant 0 : i32
    %c0_i32_0 = arith.constant 0 : i32
    %c0_i32_1 = arith.constant 0 : i32
    return %c0_i32, %c0_i32_0 : i32, i32
  }
  func.func @transform_3(%arg0: i32) -> (i32, i32) {
    %c0_i32 = arith.constant 0 : i32
    %c0_i32_0 = arith.constant 0 : i32
    %c0_i32_1 = arith.constant 0 : i32
    return %c0_i32, %c0_i32_0 : i32, i32
  }
  func.func @transform_4(%arg0: i32) -> (i32, i32) {
    %c0_i32 = arith.constant 0 : i32
    %c0_i32_0 = arith.constant 0 : i32
    %c0_i32_1 = arith.constant 0 : i32
    return %c0_i32, %c0_i32_0 : i32, i32
  }
  func.func @transform_5(%arg0: i32) -> (i32, i32) {
    %c0_i32 = arith.constant 0 : i32
    %c0_i32_0 = arith.constant 0 : i32
    %c0_i32_1 = arith.constant 0 : i32
    return %c0_i32, %c0_i32_0 : i32, i32
  }
  func.func @transform_6(%arg0: i32) -> (i32, i32) {
    %c0_i32 = arith.constant 0 : i32
    %c0_i32_0 = arith.constant 0 : i32
    %c0_i32_1 = arith.constant 0 : i32
    return %c0_i32, %c0_i32_0 : i32, i32
  }
  func.func @transform_7(%arg0: i32) -> (i32, i32) {
    %c0_i32 = arith.constant 0 : i32
    %c0_i32_0 = arith.constant 0 : i32
    %c0_i32_1 = arith.constant 0 : i32
    return %c0_i32, %c0_i32_0 : i32, i32
  }
  func.func @transform_8(%arg0: i32) -> (i32, i32) {
    %c0_i32 = arith.constant 0 : i32
    %c0_i32_0 = arith.constant 0 : i32
    %c0_i32_1 = arith.constant 0 : i32
    return %c0_i32, %c0_i32_0 : i32, i32
  }
  func.func @transform_9(%arg0: i32) -> (i32, i32) {
    %c0_i32 = arith.constant 0 : i32
    %c0_i32_0 = arith.constant 0 : i32
    return %arg0, %c0_i32 : i32, i32
  }
}

</mosaic_0001>

<llo_original>
// kernel: tpu_custom_call.1
$region0: #{tpu_custom_call.1}
  #allocation0 [shape = 'u32[]', space=smem, size = 0x4, offset = 0x4, fixed_abs, tag = 'smem constant byte address 0x4 - core index']
  #allocation1 [shape = 'u32[72,128]{1,0:T(1,128)}', space=vmem, size = 0x9000, scoped, tag = 'internal scratch']
  %s0 = inlined_call_operand.vmem [shape: f32[8,2], index: 0, kind: input, shape index: {}]
  %s1 = inlined_call_operand.hbm [shape: f32[2,1024], index: 1, kind: input, shape index: {}]
  %s2 = inlined_call_operand.vmem [shape: f32[1,1024], index: 2, kind: input, shape index: {}]
  %s3 = inlined_call_operand.hbm [shape: bf16[1024,512], index: 3, kind: input, shape index: {}]
  %s4 = inlined_call_operand.vmem [shape: f32[1,512], index: 4, kind: input, shape index: {}]
  %s5 = inlined_call_operand.hbm [shape: bf16[512,256], index: 5, kind: input, shape index: {}]
  %s6 = inlined_call_operand.vmem [shape: f32[1,256], index: 6, kind: input, shape index: {}]
  %s7 = inlined_call_operand.hbm [shape: bf16[256,128], index: 7, kind: input, shape index: {}]
  %s8 = inlined_call_operand.vmem [shape: f32[1,128], index: 8, kind: input, shape index: {}]
  %s9 = inlined_call_operand.hbm [shape: f32[8,128], index: 9, kind: output, shape index: {}]
  %s10 = sld [smem:[#allocation0]]
  $region62: #{tpu_custom_call.1} parent=0
    _
  %s12 = ssub.s32 1, %s10
  %s13 = scalar_select 0, %s12, %s10
  $region1: #{tpu_custom_call.1} parent=0
    #allocation2 [shape = 'u8[8192]{0}', space=vmem, size = 0x2000, scoped, tag = 'input window, operand 1, single buffered']
    #allocation3 [shape = 's32[1]{0}', space=sflag, size = 0x4, scoped, tag = 'scoped memory for tpu_custom_call.1']
    #allocation4 [shape = 's32[1]{0}', space=sflag, size = 0x4, scoped, tag = 'scoped memory for tpu_custom_call.1']
    #allocation5 [shape = 'u8[1048576]{0}', space=vmem, size = 0x100000, scoped, tag = 'input window, operand 3, single buffered']
    #allocation6 [shape = 's32[1]{0}', space=sflag, size = 0x4, scoped, tag = 'scoped memory for tpu_custom_call.1']
    #allocation7 [shape = 'u8[262144]{0}', space=vmem, size = 0x40000, scoped, tag = 'input window, operand 5, single buffered']
    #allocation8 [shape = 'u8[65536]{0}', space=vmem, size = 0x10000, scoped, tag = 'input window, operand 7, single buffered']
    #allocation9 [shape = 's32[1]{0}', space=sflag, size = 0x4, scoped, tag = 'scoped memory for tpu_custom_call.1']
    #allocation10 [shape = 'u8[4096]{0}', space=vmem, size = 0x1000, scoped, tag = 'output window, operand 0, single buffered']
    %14 = vsyncpa [#allocation3], 0
    %15 = vsyncpa [#allocation6], 0
    %16 = vsyncpa [#allocation9], 0
    %17 = vsyncpa [#allocation4], 0
    // Predicated region
    $region2: #{tpu_custom_call.1} parent=1 // pred_check
      _
    $region3: #{tpu_custom_call.1} parent=1 // pred_check_branch
      %19 = sbr.rel (0) target = $region5
    $region4: #{tpu_custom_call.1} parent=1 // pred_region
      _
    $region5: #{tpu_custom_call.1} parent=1 // pred_fallthru
      _
    // Predicated region
    $region6: #{tpu_custom_call.1} parent=1 // pred_check
      _
    $region7: #{tpu_custom_call.1} parent=1 // pred_check_branch
      %21 = sbr.rel (0) target = $region9
    $region8: #{tpu_custom_call.1} parent=1 // pred_region
      %23 = vsyncadd [#allocation3], 0
      %s25 = sshll.u32 %s1, 4
      %s26 = int_to_ptr.hbm [resolvable:$true] %s25
      %s27 = sshll.u32 [#allocation2], 4
      %s28 = int_to_ptr.vmem [resolvable:$true] %s27
      %30 = dma.hbm_to_vmem [thread:$0]  %s26, 256, %s28, [#allocation3]
    $region9: #{tpu_custom_call.1} parent=1 // pred_fallthru
      _
    // Predicated region
    $region10: #{tpu_custom_call.1} parent=1 // pred_check
      _
    $region11: #{tpu_custom_call.1} parent=1 // pred_check_branch
      %32 = sbr.rel (0) target = $region13
    $region12: #{tpu_custom_call.1} parent=1 // pred_region
      _
    $region13: #{tpu_custom_call.1} parent=1 // pred_fallthru
      _
    // Predicated region
    $region14: #{tpu_custom_call.1} parent=1 // pred_check
      _
    $region15: #{tpu_custom_call.1} parent=1 // pred_check_branch
      %34 = sbr.rel (0) target = $region17
    $region16: #{tpu_custom_call.1} parent=1 // pred_region
      %36 = vsyncadd [#allocation6], 0
      %s37 = sshll.u32 %s3, 4
      %s38 = int_to_ptr.hbm [resolvable:$true] %s37
      %s39 = sshll.u32 [#allocation5], 4
      %s40 = int_to_ptr.vmem [resolvable:$true] %s39
      %45 = dma.hbm_to_vmem [thread:$0]  %s38, 32768, %s40, [#allocation6], 256, 256, 16
    $region17: #{tpu_custom_call.1} parent=1 // pred_fallthru
      _
    // Predicated region
    $region18: #{tpu_custom_call.1} parent=1 // pred_check
      _
    $region19: #{tpu_custom_call.1} parent=1 // pred_check_branch
      %47 = sbr.rel (0) target = $region21
    $region20: #{tpu_custom_call.1} parent=1 // pred_region
      _
    $region21: #{tpu_custom_call.1} parent=1 // pred_fallthru
      _
    // Predicated region
    $region22: #{tpu_custom_call.1} parent=1 // pred_check
      _
    $region23: #{tpu_custom_call.1} parent=1 // pred_check_branch
      %49 = sbr.rel (0) target = $region25
    $region24: #{tpu_custom_call.1} parent=1 // pred_region
      %51 = vsyncadd [#allocation6], 0
      %s52 = sshll.u32 %s5, 4
      %s53 = int_to_ptr.hbm [resolvable:$true] %s52
      %s54 = sshll.u32 [#allocation7], 4
      %s55 = int_to_ptr.vmem [resolvable:$true] %s54
      %60 = dma.hbm_to_vmem [thread:$0]  %s53, 8192, %s55, [#allocation6], 128, 128, 8
    $region25: #{tpu_custom_call.1} parent=1 // pred_fallthru
      _
    // Predicated region
    $region26: #{tpu_custom_call.1} parent=1 // pred_check
      _
    $region27: #{tpu_custom_call.1} parent=1 // pred_check_branch
      %62 = sbr.rel (0) target = $region29
    $region28: #{tpu_custom_call.1} parent=1 // pred_region
      _
    $region29: #{tpu_custom_call.1} parent=1 // pred_fallthru
      _
    // Predicated region
    $region30: #{tpu_custom_call.1} parent=1 // pred_check
      _
    $region31: #{tpu_custom_call.1} parent=1 // pred_check_branch
      %64 = sbr.rel (0) target = $region33
    $region32: #{tpu_custom_call.1} parent=1 // pred_region
      %66 = vsyncadd [#allocation9], 0
      %s67 = sshll.u32 %s7, 4
      %s68 = int_to_ptr.hbm [resolvable:$true] %s67
      %s69 = sshll.u32 [#allocation8], 4
      %s70 = int_to_ptr.vmem [resolvable:$true] %s69
      %75 = dma.hbm_to_vmem [thread:$0]  %s68, 2048, %s70, [#allocation9], 64, 64, 4
    $region33: #{tpu_custom_call.1} parent=1 // pred_fallthru
      _
    // Predicated region
    $region34: #{tpu_custom_call.1} parent=1 // pred_check
      _
    $region35: #{tpu_custom_call.1} parent=1 // pred_check_branch
      %77 = sbr.rel (0) target = $region37
    $region36: #{tpu_custom_call.1} parent=1 // pred_region
      _
    $region37: #{tpu_custom_call.1} parent=1 // pred_fallthru
      _
    // Predicated region
    $region38: #{tpu_custom_call.1} parent=1 // pred_check
      _
    $region39: #{tpu_custom_call.1} parent=1 // pred_check_branch
      %79 = sbr.rel (0) target = $region41
    $region40: #{tpu_custom_call.1} parent=1 // pred_region
      %81 = dma.done [#allocation3], 256
    $region41: #{tpu_custom_call.1} parent=1 // pred_fallthru
      _
    // Predicated region
    $region42: #{tpu_custom_call.1} parent=1 // pred_check
      _
    $region43: #{tpu_custom_call.1} parent=1 // pred_check_branch
      %83 = sbr.rel (0) target = $region45
    $region44: #{tpu_custom_call.1} parent=1 // pred_region
      %85 = dma.done [#allocation6], 32768
    $region45: #{tpu_custom_call.1} parent=1 // pred_fallthru
      _
    // Predicated region
    $region46: #{tpu_custom_call.1} parent=1 // pred_check
      _
    $region47: #{tpu_custom_call.1} parent=1 // pred_check_branch
      %87 = sbr.rel (0) target = $region49
    $region48: #{tpu_custom_call.1} parent=1 // pred_region
      %89 = dma.done [#allocation6], 8192
    $region49: #{tpu_custom_call.1} parent=1 // pred_fallthru
      _
    // Predicated region
    $region50: #{tpu_custom_call.1} parent=1 // pred_check
      _
    $region51: #{tpu_custom_call.1} parent=1 // pred_check_branch
      %91 = sbr.rel (0) target = $region53
    $region52: #{tpu_custom_call.1} parent=1 // pred_region
      %93 = dma.done [#allocation9], 2048
    $region53: #{tpu_custom_call.1} parent=1 // pred_fallthru
      _
    %v94 = vld [vmem:[%s0] sm:$0xff]
    %v95 = vld [vmem:[#allocation2] sm:$0xff]
    %v96 = vld [vmem:[#allocation2 + $0x8] sm:$0xff]
    %98 = vset.pattern.permute.xlu0 0
    %99 = vperm.xlu0 %98, %v94
    %v100 = vpop.permute.xlu0 %99
    %v104 = vperm.slane %v95, 0
    %v105 = vperm.slane %v95, 2
    %v106 = vperm.slane %v95, 4
    %v107 = vperm.slane %v95, 6
    %v108 = vperm.slane %v96, 0
    %v109 = vperm.slane %v96, 2
    %v110 = vperm.slane %v96, 4
    %v111 = vperm.slane %v96, 6
    %v120 = vperm.slane %v104, 0
    %v121 = vperm.slane %v105, 0
    %v122 = vperm.slane %v106, 0
    %v123 = vperm.slane %v107, 0
    %v124 = vperm.slane %v108, 0
    %v125 = vperm.slane %v109, 0
    %v126 = vperm.slane %v110, 0
    %v127 = vperm.slane %v111, 0
    %v128 = vmul.f32 %v100, %v120
    %v129 = vmul.f32 %v100, %v121
    %v130 = vmul.f32 %v100, %v122
    %v131 = vmul.f32 %v100, %v123
    %v132 = vmul.f32 %v100, %v124
    %v133 = vmul.f32 %v100, %v125
    %v134 = vmul.f32 %v100, %v126
    %v135 = vmul.f32 %v100, %v127
    %136 = vset.pattern.permute.xlu0 1
    %137 = vperm.xlu0 %136, %v94
    %v138 = vpop.permute.xlu0 %137
    %v140 = vperm.slane %v95, 1
    %v141 = vperm.slane %v95, 3
    %v142 = vperm.slane %v95, 5
    %v143 = vperm.slane %v95, 7
    %v144 = vperm.slane %v96, 1
    %v145 = vperm.slane %v96, 3
    %v146 = vperm.slane %v96, 5
    %v147 = vperm.slane %v96, 7
    %v156 = vperm.slane %v140, 1
    %v157 = vperm.slane %v141, 1
    %v158 = vperm.slane %v142, 1
    %v159 = vperm.slane %v143, 1
    %v160 = vperm.slane %v144, 1
    %v161 = vperm.slane %v145, 1
    %v162 = vperm.slane %v146, 1
    %v163 = vperm.slane %v147, 1
    %v164 = vmul.f32 %v138, %v156
    %v165 = vmul.f32 %v138, %v157
    %v166 = vmul.f32 %v138, %v158
    %v167 = vmul.f32 %v138, %v159
    %v168 = vmul.f32 %v138, %v160
    %v169 = vmul.f32 %v138, %v161
    %v170 = vmul.f32 %v138, %v162
    %v171 = vmul.f32 %v138, %v163
    %v172 = vadd.f32 %v128, %v164
    %v173 = vadd.f32 %v129, %v165
    %v174 = vadd.f32 %v130, %v166
    %v175 = vadd.f32 %v131, %v167
    %v176 = vadd.f32 %v132, %v168
    %v177 = vadd.f32 %v133, %v169
    %v178 = vadd.f32 %v134, %v170
    %v179 = vadd.f32 %v135, %v171
    %v180 = vld [vmem:[%s2] sm:$0xff]
    %v182 = vperm.slane %v180, 0
    %v183 = vperm.slane %v180, 1
    %v184 = vperm.slane %v180, 2
    %v185 = vperm.slane %v180, 3
    %v186 = vperm.slane %v180, 4
    %v187 = vperm.slane %v180, 5
    %v188 = vperm.slane %v180, 6
    %v189 = vperm.slane %v180, 7
    %v198 = vadd.f32 %v172, %v182
    %v199 = vadd.f32 %v173, %v183
    %v200 = vadd.f32 %v174, %v184
    %v201 = vadd.f32 %v175, %v185
    %v202 = vadd.f32 %v176, %v186
    %v203 = vadd.f32 %v177, %v187
    %v204 = vadd.f32 %v178, %v188
    %v205 = vadd.f32 %v179, %v189
    %v206 = vpack.c.bf16 %v198, %v198
    %v207 = vpack.c.bf16 %v199, %v199
    %v208 = vpack.c.bf16 %v200, %v200
    %v209 = vpack.c.bf16 %v201, %v201
    %v210 = vpack.c.bf16 %v202, %v202
    %v211 = vpack.c.bf16 %v203, %v203
    %v212 = vpack.c.bf16 %v204, %v204
    %v213 = vpack.c.bf16 %v205, %v205
    %v214 = vld [vmem:[#allocation5] sm:$0xff]
    %v215 = vld [vmem:[#allocation5 + $0x8] sm:$0xff]
    %v216 = vld [vmem:[#allocation5 + $0x10] sm:$0xff]
    %v217 = vld [vmem:[#allocation5 + $0x18] sm:$0xff]
    %v218 = vld [vmem:[#allocation5 + $0x20] sm:$0xff]
    %v219 = vld [vmem:[#allocation5 + $0x28] sm:$0xff]
    %v220 = vld [vmem:[#allocation5 + $0x30] sm:$0xff]
    %v221 = vld [vmem:[#allocation5 + $0x38] sm:$0xff]
    %v222 = vld [vmem:[#allocation5 + $0x40] sm:$0xff]
    %v223 = vld [vmem:[#allocation5 + $0x48] sm:$0xff]
    %v224 = vld [vmem:[#allocation5 + $0x50] sm:$0xff]
    %v225 = vld [vmem:[#allocation5 + $0x58] sm:$0xff]
    %v226 = vld [vmem:[#allocation5 + $0x60] sm:$0xff]
    %v227 = vld [vmem:[#allocation5 + $0x68] sm:$0xff]
    %v228 = vld [vmem:[#allocation5 + $0x70] sm:$0xff]
    %v229 = vld [vmem:[#allocation5 + $0x78] sm:$0xff]
    %v230 = vld [vmem:[#allocation5 + $0x80] sm:$0xff]
    %v231 = vld [vmem:[#allocation5 + $0x88] sm:$0xff]
    %v232 = vld [vmem:[#allocation5 + $0x90] sm:$0xff]
    %v233 = vld [vmem:[#allocation5 + $0x98] sm:$0xff]
    %v234 = vld [vmem:[#allocation5 + $0xa0] sm:$0xff]
    %v235 = vld [vmem:[#allocation5 + $0xa8] sm:$0xff]
    %v236 = vld [vmem:[#allocation5 + $0xb0] sm:$0xff]
    %v237 = vld [vmem:[#allocation5 + $0xb8] sm:$0xff]
    %v238 = vld [vmem:[#allocation5 + $0xc0] sm:$0xff]
    %v239 = vld [vmem:[#allocation5 + $0xc8] sm:$0xff]
    %v240 = vld [vmem:[#allocation5 + $0xd0] sm:$0xff]
    %v241 = vld [vmem:[#allocation5 + $0xd8] sm:$0xff]
    %v242 = vld [vmem:[#allocation5 + $0xe0] sm:$0xff]
    %v243 = vld [vmem:[#allocation5 + $0xe8] sm:$0xff]
    %v244 = vld [vmem:[#allocation5 + $0xf0] sm:$0xff]
    %v245 = vld [vmem:[#allocation5 + $0xf8] sm:$0xff]
    %v246 = vld [vmem:[#allocation5 + $0x100] sm:$0xff]
    %v247 = vld [vmem:[#allocation5 + $0x108] sm:$0xff]
    %v248 = vld [vmem:[#allocation5 + $0x110] sm:$0xff]
    %v249 = vld [vmem:[#allocation5 + $0x118] sm:$0xff]
    %v250 = vld [vmem:[#allocation5 + $0x120] sm:$0xff]
    %v251 = vld [vmem:[#allocation5 + $0x128] sm:$0xff]
    %v252 = vld [vmem:[#allocation5 + $0x130] sm:$0xff]
    %v253 = vld [vmem:[#allocation5 + $0x138] sm:$0xff]
    %v254 = vld [vmem:[#allocation5 + $0x140] sm:$0xff]
    %v255 = vld [vmem:[#allocation5 + $0x148] sm:$0xff]
    %v256 = vld [vmem:[#allocation5 + $0x150] sm:$0xff]
    %v257 = vld [vmem:[#allocation5 + $0x158] sm:$0xff]
    %v258 = vld [vmem:[#allocation5 + $0x160] sm:$0xff]
    %v259 = vld [vmem:[#allocation5 + $0x168] sm:$0xff]
    %v260 = vld [vmem:[#allocation5 + $0x170] sm:$0xff]
    %v261 = vld [vmem:[#allocation5 + $0x178] sm:$0xff]
    %v262 = vld [vmem:[#allocation5 + $0x180] sm:$0xff]
    %v263 = vld [vmem:[#allocation5 + $0x188] sm:$0xff]
    %v264 = vld [vmem:[#allocation5 + $0x190] sm:$0xff]
    %v265 = vld [vmem:[#allocation5 + $0x198] sm:$0xff]
    %v266 = vld [vmem:[#allocation5 + $0x1a0] sm:$0xff]
    %v267 = vld [vmem:[#allocation5 + $0x1a8] sm:$0xff]
    %v268 = vld [vmem:[#allocation5 + $0x1b0] sm:$0xff]
    %v269 = vld [vmem:[#allocation5 + $0x1b8] sm:$0xff]
    %v270 = vld [vmem:[#allocation5 + $0x1c0] sm:$0xff]
    %v271 = vld [vmem:[#allocation5 + $0x1c8] sm:$0xff]
    %v272 = vld [vmem:[#allocation5 + $0x1d0] sm:$0xff]
    %v273 = vld [vmem:[#allocation5 + $0x1d8] sm:$0xff]
    %v274 = vld [vmem:[#allocation5 + $0x1e0] sm:$0xff]
    %v275 = vld [vmem:[#allocation5 + $0x1e8] sm:$0xff]
    %v276 = vld [vmem:[#allocation5 + $0x1f0] sm:$0xff]
    %v277 = vld [vmem:[#allocation5 + $0x1f8] sm:$0xff]
    %v278 = vld [vmem:[#allocation5 + $0x200] sm:$0xff]
    %v279 = vld [vmem:[#allocation5 + $0x208] sm:$0xff]
    %v280 = vld [vmem:[#allocation5 + $0x210] sm:$0xff]
    %v281 = vld [vmem:[#allocation5 + $0x218] sm:$0xff]
    %v282 = vld [vmem:[#allocation5 + $0x220] sm:$0xff]
    %v283 = vld [vmem:[#allocation5 + $0x228] sm:$0xff]
    %v284 = vld [vmem:[#allocation5 + $0x230] sm:$0xff]
    %v285 = vld [vmem:[#allocation5 + $0x238] sm:$0xff]
    %v286 = vld [vmem:[#allocation5 + $0x240] sm:$0xff]
    %v287 = vld [vmem:[#allocation5 + $0x248] sm:$0xff]
    %v288 = vld [vmem:[#allocation5 + $0x250] sm:$0xff]
    %v289 = vld [vmem:[#allocation5 + $0x258] sm:$0xff]
    %v290 = vld [vmem:[#allocation5 + $0x260] sm:$0xff]
    %v291 = vld [vmem:[#allocation5 + $0x268] sm:$0xff]
    %v292 = vld [vmem:[#allocation5 + $0x270] sm:$0xff]
    %v293 = vld [vmem:[#allocation5 + $0x278] sm:$0xff]
    %v294 = vld [vmem:[#allocation5 + $0x280] sm:$0xff]
    %v295 = vld [vmem:[#allocation5 + $0x288] sm:$0xff]
    %v296 = vld [vmem:[#allocation5 + $0x290] sm:$0xff]
    %v297 = vld [vmem:[#allocation5 + $0x298] sm:$0xff]
    %v298 = vld [vmem:[#allocation5 + $0x2a0] sm:$0xff]
    %v299 = vld [vmem:[#allocation5 + $0x2a8] sm:$0xff]
    %v300 = vld [vmem:[#allocation5 + $0x2b0] sm:$0xff]
    %v301 = vld [vmem:[#allocation5 + $0x2b8] sm:$0xff]
    %v302 = vld [vmem:[#allocation5 + $0x2c0] sm:$0xff]
    %v303 = vld [vmem:[#allocation5 + $0x2c8] sm:$0xff]
    %v304 = vld [vmem:[#allocation5 + $0x2d0] sm:$0xff]
    %v305 = vld [vmem:[#allocation5 + $0x2d8] sm:$0xff]
    %v306 = vld [vmem:[#allocation5 + $0x2e0] sm:$0xff]
    %v307 = vld [vmem:[#allocation5 + $0x2e8] sm:$0xff]
    %v308 = vld [vmem:[#allocation5 + $0x2f0] sm:$0xff]
    %v309 = vld [vmem:[#allocation5 + $0x2f8] sm:$0xff]
    %v310 = vld [vmem:[#allocation5 + $0x300] sm:$0xff]
    %v311 = vld [vmem:[#allocation5 + $0x308] sm:$0xff]
    %v312 = vld [vmem:[#allocation5 + $0x310] sm:$0xff]
    %v313 = vld [vmem:[#allocation5 + $0x318] sm:$0xff]
    %v314 = vld [vmem:[#allocation5 + $0x320] sm:$0xff]
    %v315 = vld [vmem:[#allocation5 + $0x328] sm:$0xff]
    %v316 = vld [vmem:[#allocation5 + $0x330] sm:$0xff]
    %v317 = vld [vmem:[#allocation5 + $0x338] sm:$0xff]
    %v318 = vld [vmem:[#allocation5 + $0x340] sm:$0xff]
    %v319 = vld [vmem:[#allocation5 + $0x348] sm:$0xff]
    %v320 = vld [vmem:[#allocation5 + $0x350] sm:$0xff]
    %v321 = vld [vmem:[#allocation5 + $0x358] sm:$0xff]
    %v322 = vld [vmem:[#allocation5 + $0x360] sm:$0xff]
    %v323 = vld [vmem:[#allocation5 + $0x368] sm:$0xff]
    %v324 = vld [vmem:[#allocation5 + $0x370] sm:$0xff]
    %v325 = vld [vmem:[#allocation5 + $0x378] sm:$0xff]
    %v326 = vld [vmem:[#allocation5 + $0x380] sm:$0xff]
    %v327 = vld [vmem:[#allocation5 + $0x388] sm:$0xff]
    %v328 = vld [vmem:[#allocation5 + $0x390] sm:$0xff]
    %v329 = vld [vmem:[#allocation5 + $0x398] sm:$0xff]
    %v330 = vld [vmem:[#allocation5 + $0x3a0] sm:$0xff]
    %v331 = vld [vmem:[#allocation5 + $0x3a8] sm:$0xff]
    %v332 = vld [vmem:[#allocation5 + $0x3b0] sm:$0xff]
    %v333 = vld [vmem:[#allocation5 + $0x3b8] sm:$0xff]
    %v334 = vld [vmem:[#allocation5 + $0x3c0] sm:$0xff]
    %v335 = vld [vmem:[#allocation5 + $0x3c8] sm:$0xff]
    %v336 = vld [vmem:[#allocation5 + $0x3d0] sm:$0xff]
    %v337 = vld [vmem:[#allocation5 + $0x3d8] sm:$0xff]
    %v338 = vld [vmem:[#allocation5 + $0x3e0] sm:$0xff]
    %v339 = vld [vmem:[#allocation5 + $0x3e8] sm:$0xff]
    %v340 = vld [vmem:[#allocation5 + $0x3f0] sm:$0xff]
    %v341 = vld [vmem:[#allocation5 + $0x3f8] sm:$0xff]
    %v342 = vld [vmem:[#allocation5 + $0x400] sm:$0xff]
    %v343 = vld [vmem:[#allocation5 + $0x408] sm:$0xff]
    %v344 = vld [vmem:[#allocation5 + $0x410] sm:$0xff]
    %v345 = vld [vmem:[#allocation5 + $0x418] sm:$0xff]
    %v346 = vld [vmem:[#allocation5 + $0x420] sm:$0xff]
    %v347 = vld [vmem:[#allocation5 + $0x428] sm:$0xff]
    %v348 = vld [vmem:[#allocation5 + $0x430] sm:$0xff]
    %v349 = vld [vmem:[#allocation5 + $0x438] sm:$0xff]
    %v350 = vld [vmem:[#allocation5 + $0x440] sm:$0xff]
    %v351 = vld [vmem:[#allocation5 + $0x448] sm:$0xff]
    %v352 = vld [vmem:[#allocation5 + $0x450] sm:$0xff]
    %v353 = vld [vmem:[#allocation5 + $0x458] sm:$0xff]
    %v354 = vld [vmem:[#allocation5 + $0x460] sm:$0xff]
    %v355 = vld [vmem:[#allocation5 + $0x468] sm:$0xff]
    %v356 = vld [vmem:[#allocation5 + $0x470] sm:$0xff]
    %v357 = vld [vmem:[#allocation5 + $0x478] sm:$0xff]
    %v358 = vld [vmem:[#allocation5 + $0x480] sm:$0xff]
    %v359 = vld [vmem:[#allocation5 + $0x488] sm:$0xff]
    %v360 = vld [vmem:[#allocation5 + $0x490] sm:$0xff]
    %v361 = vld [vmem:[#allocation5 + $0x498] sm:$0xff]
    %v362 = vld [vmem:[#allocation5 + $0x4a0] sm:$0xff]
    %v363 = vld [vmem:[#allocation5 + $0x4a8] sm:$0xff]
    %v364 = vld [vmem:[#allocation5 + $0x4b0] sm:$0xff]
    %v365 = vld [vmem:[#allocation5 + $0x4b8] sm:$0xff]
    %v366 = vld [vmem:[#allocation5 + $0x4c0] sm:$0xff]
    %v367 = vld [vmem:[#allocation5 + $0x4c8] sm:$0xff]
    %v368 = vld [vmem:[#allocation5 + $0x4d0] sm:$0xff]
    %v369 = vld [vmem:[#allocation5 + $0x4d8] sm:$0xff]
    %v370 = vld [vmem:[#allocation5 + $0x4e0] sm:$0xff]
    %v371 = vld [vmem:[#allocation5 + $0x4e8] sm:$0xff]
    %v372 = vld [vmem:[#allocation5 + $0x4f0] sm:$0xff]
    %v373 = vld [vmem:[#allocation5 + $0x4f8] sm:$0xff]
    %v374 = vld [vmem:[#allocation5 + $0x500] sm:$0xff]
    %v375 = vld [vmem:[#allocation5 + $0x508] sm:$0xff]
    %v376 = vld [vmem:[#allocation5 + $0x510] sm:$0xff]
    %v377 = vld [vmem:[#allocation5 + $0x518] sm:$0xff]
    %v378 = vld [vmem:[#allocation5 + $0x520] sm:$0xff]
    %v379 = vld [vmem:[#allocation5 + $0x528] sm:$0xff]
    %v380 = vld [vmem:[#allocation5 + $0x530] sm:$0xff]
    %v381 = vld [vmem:[#allocation5 + $0x538] sm:$0xff]
    %v382 = vld [vmem:[#allocation5 + $0x540] sm:$0xff]
    %v383 = vld [vmem:[#allocation5 + $0x548] sm:$0xff]
    %v384 = vld [vmem:[#allocation5 + $0x550] sm:$0xff]
    %v385 = vld [vmem:[#allocation5 + $0x558] sm:$0xff]
    %v386 = vld [vmem:[#allocation5 + $0x560] sm:$0xff]
    %v387 = vld [vmem:[#allocation5 + $0x568] sm:$0xff]
    %v388 = vld [vmem:[#allocation5 + $0x570] sm:$0xff]
    %v389 = vld [vmem:[#allocation5 + $0x578] sm:$0xff]
    %v390 = vld [vmem:[#allocation5 + $0x580] sm:$0xff]
    %v391 = vld [vmem:[#allocation5 + $0x588] sm:$0xff]
    %v392 = vld [vmem:[#allocation5 + $0x590] sm:$0xff]
    %v393 = vld [vmem:[#allocation5 + $0x598] sm:$0xff]
    %v394 = vld [vmem:[#allocation5 + $0x5a0] sm:$0xff]
    %v395 = vld [vmem:[#allocation5 + $0x5a8] sm:$0xff]
    %v396 = vld [vmem:[#allocation5 + $0x5b0] sm:$0xff]
    %v397 = vld [vmem:[#allocation5 + $0x5b8] sm:$0xff]
    %v398 = vld [vmem:[#allocation5 + $0x5c0] sm:$0xff]
    %v399 = vld [vmem:[#allocation5 + $0x5c8] sm:$0xff]
    %v400 = vld [vmem:[#allocation5 + $0x5d0] sm:$0xff]
    %v401 = vld [vmem:[#allocation5 + $0x5d8] sm:$0xff]
    %v402 = vld [vmem:[#allocation5 + $0x5e0] sm:$0xff]
    %v403 = vld [vmem:[#allocation5 + $0x5e8] sm:$0xff]
    %v404 = vld [vmem:[#allocation5 + $0x5f0] sm:$0xff]
    %v405 = vld [vmem:[#allocation5 + $0x5f8] sm:$0xff]
    %v406 = vld [vmem:[#allocation5 + $0x600] sm:$0xff]
    %v407 = vld [vmem:[#allocation5 + $0x608] sm:$0xff]
    %v408 = vld [vmem:[#allocation5 + $0x610] sm:$0xff]
    %v409 = vld [vmem:[#allocation5 + $0x618] sm:$0xff]
    %v410 = vld [vmem:[#allocation5 + $0x620] sm:$0xff]
    %v411 = vld [vmem:[#allocation5 + $0x628] sm:$0xff]
    %v412 = vld [vmem:[#allocation5 + $0x630] sm:$0xff]
    %v413 = vld [vmem:[#allocation5 + $0x638] sm:$0xff]
    %v414 = vld [vmem:[#allocation5 + $0x640] sm:$0xff]
    %v415 = vld [vmem:[#allocation5 + $0x648] sm:$0xff]
    %v416 = vld [vmem:[#allocation5 + $0x650] sm:$0xff]
    %v417 = vld [vmem:[#allocation5 + $0x658] sm:$0xff]
    %v418 = vld [vmem:[#allocation5 + $0x660] sm:$0xff]
    %v419 = vld [vmem:[#allocation5 + $0x668] sm:$0xff]
    %v420 = vld [vmem:[#allocation5 + $0x670] sm:$0xff]
    %v421 = vld [vmem:[#allocation5 + $0x678] sm:$0xff]
    %v422 = vld [vmem:[#allocation5 + $0x680] sm:$0xff]
    %v423 = vld [vmem:[#allocation5 + $0x688] sm:$0xff]
    %v424 = vld [vmem:[#allocation5 + $0x690] sm:$0xff]
    %v425 = vld [vmem:[#allocation5 + $0x698] sm:$0xff]
    %v426 = vld [vmem:[#allocation5 + $0x6a0] sm:$0xff]
    %v427 = vld [vmem:[#allocation5 + $0x6a8] sm:$0xff]
    %v428 = vld [vmem:[#allocation5 + $0x6b0] sm:$0xff]
    %v429 = vld [vmem:[#allocation5 + $0x6b8] sm:$0xff]
    %v430 = vld [vmem:[#allocation5 + $0x6c0] sm:$0xff]
    %v431 = vld [vmem:[#allocation5 + $0x6c8] sm:$0xff]
    %v432 = vld [vmem:[#allocation5 + $0x6d0] sm:$0xff]
    %v433 = vld [vmem:[#allocation5 + $0x6d8] sm:$0xff]
    %v434 = vld [vmem:[#allocation5 + $0x6e0] sm:$0xff]
    %v435 = vld [vmem:[#allocation5 + $0x6e8] sm:$0xff]
    %v436 = vld [vmem:[#allocation5 + $0x6f0] sm:$0xff]
    %v437 = vld [vmem:[#allocation5 + $0x6f8] sm:$0xff]
    %v438 = vld [vmem:[#allocation5 + $0x700] sm:$0xff]
    %v439 = vld [vmem:[#allocation5 + $0x708] sm:$0xff]
    %v440 = vld [vmem:[#allocation5 + $0x710] sm:$0xff]
    %v441 = vld [vmem:[#allocation5 + $0x718] sm:$0xff]
    %v442 = vld [vmem:[#allocation5 + $0x720] sm:$0xff]
    %v443 = vld [vmem:[#allocation5 + $0x728] sm:$0xff]
    %v444 = vld [vmem:[#allocation5 + $0x730] sm:$0xff]
    %v445 = vld [vmem:[#allocation5 + $0x738] sm:$0xff]
    %v446 = vld [vmem:[#allocation5 + $0x740] sm:$0xff]
    %v447 = vld [vmem:[#allocation5 + $0x748] sm:$0xff]
    %v448 = vld [vmem:[#allocation5 + $0x750] sm:$0xff]
    %v449 = vld [vmem:[#allocation5 + $0x758] sm:$0xff]
    %v450 = vld [vmem:[#allocation5 + $0x760] sm:$0xff]
    %v451 = vld [vmem:[#allocation5 + $0x768] sm:$0xff]
    %v452 = vld [vmem:[#allocation5 + $0x770] sm:$0xff]
    %v453 = vld [vmem:[#allocation5 + $0x778] sm:$0xff]
    %v454 = vld [vmem:[#allocation5 + $0x780] sm:$0xff]
    %v455 = vld [vmem:[#allocation5 + $0x788] sm:$0xff]
    %v456 = vld [vmem:[#allocation5 + $0x790] sm:$0xff]
    %v457 = vld [vmem:[#allocation5 + $0x798] sm:$0xff]
    %v458 = vld [vmem:[#allocation5 + $0x7a0] sm:$0xff]
    %v459 = vld [vmem:[#allocation5 + $0x7a8] sm:$0xff]
    %v460 = vld [vmem:[#allocation5 + $0x7b0] sm:$0xff]
    %v461 = vld [vmem:[#allocation5 + $0x7b8] sm:$0xff]
    %v462 = vld [vmem:[#allocation5 + $0x7c0] sm:$0xff]
    %v463 = vld [vmem:[#allocation5 + $0x7c8] sm:$0xff]
    %v464 = vld [vmem:[#allocation5 + $0x7d0] sm:$0xff]
    %v465 = vld [vmem:[#allocation5 + $0x7d8] sm:$0xff]
    %v466 = vld [vmem:[#allocation5 + $0x7e0] sm:$0xff]
    %v467 = vld [vmem:[#allocation5 + $0x7e8] sm:$0xff]
    %v468 = vld [vmem:[#allocation5 + $0x7f0] sm:$0xff]
    %v469 = vld [vmem:[#allocation5 + $0x7f8] sm:$0xff]
    %v470 = vld [vmem:[%s4] sm:$0xf]
    %v472 = vperm.slane %v470, 0
    %v473 = vperm.slane %v470, 1
    %v474 = vperm.slane %v470, 2
    %v475 = vperm.slane %v470, 3
    %v736 = vunpack.c.l.b16 %v214
    %v737 = vunpack.c.h.b16 %v214
    %v738 = vunpack.c.l.b16 %v215
    %v739 = vunpack.c.h.b16 %v215
    %v740 = vunpack.c.l.b16 %v216
    %v741 = vunpack.c.h.b16 %v216
    %v742 = vunpack.c.l.b16 %v217
    %v743 = vunpack.c.h.b16 %v217
    %v744 = vunpack.c.l.b16 %v218
    %v745 = vunpack.c.h.b16 %v218
    %v746 = vunpack.c.l.b16 %v219
    %v747 = vunpack.c.h.b16 %v219
    %v748 = vunpack.c.l.b16 %v220
    %v749 = vunpack.c.h.b16 %v220
    %v750 = vunpack.c.l.b16 %v221
    %v751 = vunpack.c.h.b16 %v221
    %v752 = vunpack.c.l.b16 %v222
    %v753 = vunpack.c.h.b16 %v222
    %v754 = vunpack.c.l.b16 %v223
    %v755 = vunpack.c.h.b16 %v223
    %v756 = vunpack.c.l.b16 %v224
    %v757 = vunpack.c.h.b16 %v224
    %v758 = vunpack.c.l.b16 %v225
    %v759 = vunpack.c.h.b16 %v225
    %v760 = vunpack.c.l.b16 %v226
    %v761 = vunpack.c.h.b16 %v226
    %v762 = vunpack.c.l.b16 %v227
    %v763 = vunpack.c.h.b16 %v227
    %v764 = vunpack.c.l.b16 %v228
    %v765 = vunpack.c.h.b16 %v228
    %v766 = vunpack.c.l.b16 %v229
    %v767 = vunpack.c.h.b16 %v229
    %v768 = vunpack.c.l.b16 %v230
    %v769 = vunpack.c.h.b16 %v230
    %v770 = vunpack.c.l.b16 %v231
    %v771 = vunpack.c.h.b16 %v231
    %v772 = vunpack.c.l.b16 %v232
    %v773 = vunpack.c.h.b16 %v232
    %v774 = vunpack.c.l.b16 %v233
    %v775 = vunpack.c.h.b16 %v233
    %v776 = vunpack.c.l.b16 %v234
    %v777 = vunpack.c.h.b16 %v234
    %v778 = vunpack.c.l.b16 %v235
    %v779 = vunpack.c.h.b16 %v235
    %v780 = vunpack.c.l.b16 %v236
    %v781 = vunpack.c.h.b16 %v236
    %v782 = vunpack.c.l.b16 %v237
    %v783 = vunpack.c.h.b16 %v237
    %v784 = vunpack.c.l.b16 %v238
    %v785 = vunpack.c.h.b16 %v238
    %v786 = vunpack.c.l.b16 %v239
    %v787 = vunpack.c.h.b16 %v239
    %v788 = vunpack.c.l.b16 %v240
    %v789 = vunpack.c.h.b16 %v240
    %v790 = vunpack.c.l.b16 %v241
    %v791 = vunpack.c.h.b16 %v241
    %v792 = vunpack.c.l.b16 %v242
    %v793 = vunpack.c.h.b16 %v242
    %v794 = vunpack.c.l.b16 %v243
    %v795 = vunpack.c.h.b16 %v243
    %v796 = vunpack.c.l.b16 %v244
    %v797 = vunpack.c.h.b16 %v244
    %v798 = vunpack.c.l.b16 %v245
    %v799 = vunpack.c.h.b16 %v245
    %v800 = vunpack.c.l.b16 %v246
    %v801 = vunpack.c.h.b16 %v246
    %v802 = vunpack.c.l.b16 %v247
    %v803 = vunpack.c.h.b16 %v247
    %v804 = vunpack.c.l.b16 %v248
    %v805 = vunpack.c.h.b16 %v248
    %v806 = vunpack.c.l.b16 %v249
    %v807 = vunpack.c.h.b16 %v249
    %v808 = vunpack.c.l.b16 %v250
    %v809 = vunpack.c.h.b16 %v250
    %v810 = vunpack.c.l.b16 %v251
    %v811 = vunpack.c.h.b16 %v251
    %v812 = vunpack.c.l.b16 %v252
    %v813 = vunpack.c.h.b16 %v252
    %v814 = vunpack.c.l.b16 %v253
    %v815 = vunpack.c.h.b16 %v253
    %v816 = vunpack.c.l.b16 %v254
    %v817 = vunpack.c.h.b16 %v254
    %v818 = vunpack.c.l.b16 %v255
    %v819 = vunpack.c.h.b16 %v255
    %v820 = vunpack.c.l.b16 %v256
    %v821 = vunpack.c.h.b16 %v256
    %v822 = vunpack.c.l.b16 %v257
    %v823 = vunpack.c.h.b16 %v257
    %v824 = vunpack.c.l.b16 %v258
    %v825 = vunpack.c.h.b16 %v258
    %v826 = vunpack.c.l.b16 %v259
    %v827 = vunpack.c.h.b16 %v259
    %v828 = vunpack.c.l.b16 %v260
    %v829 = vunpack.c.h.b16 %v260
    %v830 = vunpack.c.l.b16 %v261
    %v831 = vunpack.c.h.b16 %v261
    %v832 = vunpack.c.l.b16 %v262
    %v833 = vunpack.c.h.b16 %v262
    %v834 = vunpack.c.l.b16 %v263
    %v835 = vunpack.c.h.b16 %v263
    %v836 = vunpack.c.l.b16 %v264
    %v837 = vunpack.c.h.b16 %v264
    %v838 = vunpack.c.l.b16 %v265
    %v839 = vunpack.c.h.b16 %v265
    %v840 = vunpack.c.l.b16 %v266
    %v841 = vunpack.c.h.b16 %v266
    %v842 = vunpack.c.l.b16 %v267
    %v843 = vunpack.c.h.b16 %v267
    %v844 = vunpack.c.l.b16 %v268
    %v845 = vunpack.c.h.b16 %v268
    %v846 = vunpack.c.l.b16 %v269
    %v847 = vunpack.c.h.b16 %v269
    %v848 = vunpack.c.l.b16 %v270
    %v849 = vunpack.c.h.b16 %v270
    %v850 = vunpack.c.l.b16 %v271
    %v851 = vunpack.c.h.b16 %v271
    %v852 = vunpack.c.l.b16 %v272
    %v853 = vunpack.c.h.b16 %v272
    %v854 = vunpack.c.l.b16 %v273
    %v855 = vunpack.c.h.b16 %v273
    %v856 = vunpack.c.l.b16 %v274
    %v857 = vunpack.c.h.b16 %v274
    %v858 = vunpack.c.l.b16 %v275
    %v859 = vunpack.c.h.b16 %v275
    %v860 = vunpack.c.l.b16 %v276
    %v861 = vunpack.c.h.b16 %v276
    %v862 = vunpack.c.l.b16 %v277
    %v863 = vunpack.c.h.b16 %v277
    %v864 = vunpack.c.l.b16 %v278
    %v865 = vunpack.c.h.b16 %v278
    %v866 = vunpack.c.l.b16 %v279
    %v867 = vunpack.c.h.b16 %v279
    %v868 = vunpack.c.l.b16 %v280
    %v869 = vunpack.c.h.b16 %v280
    %v870 = vunpack.c.l.b16 %v281
    %v871 = vunpack.c.h.b16 %v281
    %v872 = vunpack.c.l.b16 %v282
    %v873 = vunpack.c.h.b16 %v282
    %v874 = vunpack.c.l.b16 %v283
    %v875 = vunpack.c.h.b16 %v283
    %v876 = vunpack.c.l.b16 %v284
    %v877 = vunpack.c.h.b16 %v284
    %v878 = vunpack.c.l.b16 %v285
    %v879 = vunpack.c.h.b16 %v285
    %v880 = vunpack.c.l.b16 %v286
    %v881 = vunpack.c.h.b16 %v286
    %v882 = vunpack.c.l.b16 %v287
    %v883 = vunpack.c.h.b16 %v287
    %v884 = vunpack.c.l.b16 %v288
    %v885 = vunpack.c.h.b16 %v288
    %v886 = vunpack.c.l.b16 %v289
    %v887 = vunpack.c.h.b16 %v289
    %v888 = vunpack.c.l.b16 %v290
    %v889 = vunpack.c.h.b16 %v290
    %v890 = vunpack.c.l.b16 %v291
    %v891 = vunpack.c.h.b16 %v291
    %v892 = vunpack.c.l.b16 %v292
    %v893 = vunpack.c.h.b16 %v292
    %v894 = vunpack.c.l.b16 %v293
    %v895 = vunpack.c.h.b16 %v293
    %v896 = vunpack.c.l.b16 %v294
    %v897 = vunpack.c.h.b16 %v294
    %v898 = vunpack.c.l.b16 %v295
    %v899 = vunpack.c.h.b16 %v295
    %v900 = vunpack.c.l.b16 %v296
    %v901 = vunpack.c.h.b16 %v296
    %v902 = vunpack.c.l.b16 %v297
    %v903 = vunpack.c.h.b16 %v297
    %v904 = vunpack.c.l.b16 %v298
    %v905 = vunpack.c.h.b16 %v298
    %v906 = vunpack.c.l.b16 %v299
    %v907 = vunpack.c.h.b16 %v299
    %v908 = vunpack.c.l.b16 %v300
    %v909 = vunpack.c.h.b16 %v300
    %v910 = vunpack.c.l.b16 %v301
    %v911 = vunpack.c.h.b16 %v301
    %v912 = vunpack.c.l.b16 %v302
    %v913 = vunpack.c.h.b16 %v302
    %v914 = vunpack.c.l.b16 %v303
    %v915 = vunpack.c.h.b16 %v303
    %v916 = vunpack.c.l.b16 %v304
    %v917 = vunpack.c.h.b16 %v304
    %v918 = vunpack.c.l.b16 %v305
    %v919 = vunpack.c.h.b16 %v305
    %v920 = vunpack.c.l.b16 %v306
    %v921 = vunpack.c.h.b16 %v306
    %v922 = vunpack.c.l.b16 %v307
    %v923 = vunpack.c.h.b16 %v307
    %v924 = vunpack.c.l.b16 %v308
    %v925 = vunpack.c.h.b16 %v308
    %v926 = vunpack.c.l.b16 %v309
    %v927 = vunpack.c.h.b16 %v309
    %v928 = vunpack.c.l.b16 %v310
    %v929 = vunpack.c.h.b16 %v310
    %v930 = vunpack.c.l.b16 %v311
    %v931 = vunpack.c.h.b16 %v311
    %v932 = vunpack.c.l.b16 %v312
    %v933 = vunpack.c.h.b16 %v312
    %v934 = vunpack.c.l.b16 %v313
    %v935 = vunpack.c.h.b16 %v313
    %v936 = vunpack.c.l.b16 %v314
    %v937 = vunpack.c.h.b16 %v314
    %v938 = vunpack.c.l.b16 %v315
    %v939 = vunpack.c.h.b16 %v315
    %v940 = vunpack.c.l.b16 %v316
    %v941 = vunpack.c.h.b16 %v316
    %v942 = vunpack.c.l.b16 %v317
    %v943 = vunpack.c.h.b16 %v317
    %v944 = vunpack.c.l.b16 %v318
    %v945 = vunpack.c.h.b16 %v318
    %v946 = vunpack.c.l.b16 %v319
    %v947 = vunpack.c.h.b16 %v319
    %v948 = vunpack.c.l.b16 %v320
    %v949 = vunpack.c.h.b16 %v320
    %v950 = vunpack.c.l.b16 %v321
    %v951 = vunpack.c.h.b16 %v321
    %v952 = vunpack.c.l.b16 %v322
    %v953 = vunpack.c.h.b16 %v322
    %v954 = vunpack.c.l.b16 %v323
    %v955 = vunpack.c.h.b16 %v323
    %v956 = vunpack.c.l.b16 %v324
    %v957 = vunpack.c.h.b16 %v324
    %v958 = vunpack.c.l.b16 %v325
    %v959 = vunpack.c.h.b16 %v325
    %v960 = vunpack.c.l.b16 %v326
    %v961 = vunpack.c.h.b16 %v326
    %v962 = vunpack.c.l.b16 %v327
    %v963 = vunpack.c.h.b16 %v327
    %v964 = vunpack.c.l.b16 %v328
    %v965 = vunpack.c.h.b16 %v328
    %v966 = vunpack.c.l.b16 %v329
    %v967 = vunpack.c.h.b16 %v329
    %v968 = vunpack.c.l.b16 %v330
    %v969 = vunpack.c.h.b16 %v330
    %v970 = vunpack.c.l.b16 %v331
    %v971 = vunpack.c.h.b16 %v331
    %v972 = vunpack.c.l.b16 %v332
    %v973 = vunpack.c.h.b16 %v332
    %v974 = vunpack.c.l.b16 %v333
    %v975 = vunpack.c.h.b16 %v333
    %v976 = vunpack.c.l.b16 %v334
    %v977 = vunpack.c.h.b16 %v334
    %v978 = vunpack.c.l.b16 %v335
    %v979 = vunpack.c.h.b16 %v335
    %v980 = vunpack.c.l.b16 %v336
    %v981 = vunpack.c.h.b16 %v336
    %v982 = vunpack.c.l.b16 %v337
    %v983 = vunpack.c.h.b16 %v337
    %v984 = vunpack.c.l.b16 %v338
    %v985 = vunpack.c.h.b16 %v338
    %v986 = vunpack.c.l.b16 %v339
    %v987 = vunpack.c.h.b16 %v339
    %v988 = vunpack.c.l.b16 %v340
    %v989 = vunpack.c.h.b16 %v340
    %v990 = vunpack.c.l.b16 %v341
    %v991 = vunpack.c.h.b16 %v341
    %v992 = vunpack.c.l.b16 %v342
    %v993 = vunpack.c.h.b16 %v342
    %v994 = vunpack.c.l.b16 %v343
    %v995 = vunpack.c.h.b16 %v343
    %v996 = vunpack.c.l.b16 %v344
    %v997 = vunpack.c.h.b16 %v344
    %v998 = vunpack.c.l.b16 %v345
    %v999 = vunpack.c.h.b16 %v345
    %v1000 = vunpack.c.l.b16 %v346
    %v1001 = vunpack.c.h.b16 %v346
    %v1002 = vunpack.c.l.b16 %v347
    %v1003 = vunpack.c.h.b16 %v347
    %v1004 = vunpack.c.l.b16 %v348
    %v1005 = vunpack.c.h.b16 %v348
    %v1006 = vunpack.c.l.b16 %v349
    %v1007 = vunpack.c.h.b16 %v349
    %v1008 = vunpack.c.l.b16 %v350
    %v1009 = vunpack.c.h.b16 %v350
    %v1010 = vunpack.c.l.b16 %v351
    %v1011 = vunpack.c.h.b16 %v351
    %v1012 = vunpack.c.l.b16 %v352
    %v1013 = vunpack.c.h.b16 %v352
    %v1014 = vunpack.c.l.b16 %v353
    %v1015 = vunpack.c.h.b16 %v353
    %v1016 = vunpack.c.l.b16 %v354
    %v1017 = vunpack.c.h.b16 %v354
    %v1018 = vunpack.c.l.b16 %v355
    %v1019 = vunpack.c.h.b16 %v355
    %v1020 = vunpack.c.l.b16 %v356
    %v1021 = vunpack.c.h.b16 %v356
    %v1022 = vunpack.c.l.b16 %v357
    %v1023 = vunpack.c.h.b16 %v357
    %v1024 = vunpack.c.l.b16 %v358
    %v1025 = vunpack.c.h.b16 %v358
    %v1026 = vunpack.c.l.b16 %v359
    %v1027 = vunpack.c.h.b16 %v359
    %v1028 = vunpack.c.l.b16 %v360
    %v1029 = vunpack.c.h.b16 %v360
    %v1030 = vunpack.c.l.b16 %v361
    %v1031 = vunpack.c.h.b16 %v361
    %v1032 = vunpack.c.l.b16 %v362
    %v1033 = vunpack.c.h.b16 %v362
    %v1034 = vunpack.c.l.b16 %v363
    %v1035 = vunpack.c.h.b16 %v363
    %v1036 = vunpack.c.l.b16 %v364
    %v1037 = vunpack.c.h.b16 %v364
    %v1038 = vunpack.c.l.b16 %v365
    %v1039 = vunpack.c.h.b16 %v365
    %v1040 = vunpack.c.l.b16 %v366
    %v1041 = vunpack.c.h.b16 %v366
    %v1042 = vunpack.c.l.b16 %v367
    %v1043 = vunpack.c.h.b16 %v367
    %v1044 = vunpack.c.l.b16 %v368
    %v1045 = vunpack.c.h.b16 %v368
    %v1046 = vunpack.c.l.b16 %v369
    %v1047 = vunpack.c.h.b16 %v369
    %v1048 = vunpack.c.l.b16 %v370
    %v1049 = vunpack.c.h.b16 %v370
    %v1050 = vunpack.c.l.b16 %v371
    %v1051 = vunpack.c.h.b16 %v371
    %v1052 = vunpack.c.l.b16 %v372
    %v1053 = vunpack.c.h.b16 %v372
    %v1054 = vunpack.c.l.b16 %v373
    %v1055 = vunpack.c.h.b16 %v373
    %v1056 = vunpack.c.l.b16 %v374
    %v1057 = vunpack.c.h.b16 %v374
    %v1058 = vunpack.c.l.b16 %v375
    %v1059 = vunpack.c.h.b16 %v375
    %v1060 = vunpack.c.l.b16 %v376
    %v1061 = vunpack.c.h.b16 %v376
    %v1062 = vunpack.c.l.b16 %v377
    %v1063 = vunpack.c.h.b16 %v377
    %v1064 = vunpack.c.l.b16 %v378
    %v1065 = vunpack.c.h.b16 %v378
    %v1066 = vunpack.c.l.b16 %v379
    %v1067 = vunpack.c.h.b16 %v379
    %v1068 = vunpack.c.l.b16 %v380
    %v1069 = vunpack.c.h.b16 %v380
    %v1070 = vunpack.c.l.b16 %v381
    %v1071 = vunpack.c.h.b16 %v381
    %v1072 = vunpack.c.l.b16 %v382
    %v1073 = vunpack.c.h.b16 %v382
    %v1074 = vunpack.c.l.b16 %v383
    %v1075 = vunpack.c.h.b16 %v383
    %v1076 = vunpack.c.l.b16 %v384
    %v1077 = vunpack.c.h.b16 %v384
    %v1078 = vunpack.c.l.b16 %v385
    %v1079 = vunpack.c.h.b16 %v385
    %v1080 = vunpack.c.l.b16 %v386
    %v1081 = vunpack.c.h.b16 %v386
    %v1082 = vunpack.c.l.b16 %v387
    %v1083 = vunpack.c.h.b16 %v387
    %v1084 = vunpack.c.l.b16 %v388
    %v1085 = vunpack.c.h.b16 %v388
    %v1086 = vunpack.c.l.b16 %v389
    %v1087 = vunpack.c.h.b16 %v389
    %v1088 = vunpack.c.l.b16 %v390
    %v1089 = vunpack.c.h.b16 %v390
    %v1090 = vunpack.c.l.b16 %v391
    %v1091 = vunpack.c.h.b16 %v391
    %v1092 = vunpack.c.l.b16 %v392
    %v1093 = vunpack.c.h.b16 %v392
    %v1094 = vunpack.c.l.b16 %v393
    %v1095 = vunpack.c.h.b16 %v393
    %v1096 = vunpack.c.l.b16 %v394
    %v1097 = vunpack.c.h.b16 %v394
    %v1098 = vunpack.c.l.b16 %v395
    %v1099 = vunpack.c.h.b16 %v395
    %v1100 = vunpack.c.l.b16 %v396
    %v1101 = vunpack.c.h.b16 %v396
    %v1102 = vunpack.c.l.b16 %v397
    %v1103 = vunpack.c.h.b16 %v397
    %v1104 = vunpack.c.l.b16 %v398
    %v1105 = vunpack.c.h.b16 %v398
    %v1106 = vunpack.c.l.b16 %v399
    %v1107 = vunpack.c.h.b16 %v399
    %v1108 = vunpack.c.l.b16 %v400
    %v1109 = vunpack.c.h.b16 %v400
    %v1110 = vunpack.c.l.b16 %v401
    %v1111 = vunpack.c.h.b16 %v401
    %v1112 = vunpack.c.l.b16 %v402
    %v1113 = vunpack.c.h.b16 %v402
    %v1114 = vunpack.c.l.b16 %v403
    %v1115 = vunpack.c.h.b16 %v403
    %v1116 = vunpack.c.l.b16 %v404
    %v1117 = vunpack.c.h.b16 %v404
    %v1118 = vunpack.c.l.b16 %v405
    %v1119 = vunpack.c.h.b16 %v405
    %v1120 = vunpack.c.l.b16 %v406
    %v1121 = vunpack.c.h.b16 %v406
    %v1122 = vunpack.c.l.b16 %v407
    %v1123 = vunpack.c.h.b16 %v407
    %v1124 = vunpack.c.l.b16 %v408
    %v1125 = vunpack.c.h.b16 %v408
    %v1126 = vunpack.c.l.b16 %v409
    %v1127 = vunpack.c.h.b16 %v409
    %v1128 = vunpack.c.l.b16 %v410
    %v1129 = vunpack.c.h.b16 %v410
    %v1130 = vunpack.c.l.b16 %v411
    %v1131 = vunpack.c.h.b16 %v411
    %v1132 = vunpack.c.l.b16 %v412
    %v1133 = vunpack.c.h.b16 %v412
    %v1134 = vunpack.c.l.b16 %v413
    %v1135 = vunpack.c.h.b16 %v413
    %v1136 = vunpack.c.l.b16 %v414
    %v1137 = vunpack.c.h.b16 %v414
    %v1138 = vunpack.c.l.b16 %v415
    %v1139 = vunpack.c.h.b16 %v415
    %v1140 = vunpack.c.l.b16 %v416
    %v1141 = vunpack.c.h.b16 %v416
    %v1142 = vunpack.c.l.b16 %v417
    %v1143 = vunpack.c.h.b16 %v417
    %v1144 = vunpack.c.l.b16 %v418
    %v1145 = vunpack.c.h.b16 %v418
    %v1146 = vunpack.c.l.b16 %v419
    %v1147 = vunpack.c.h.b16 %v419
    %v1148 = vunpack.c.l.b16 %v420
    %v1149 = vunpack.c.h.b16 %v420
    %v1150 = vunpack.c.l.b16 %v421
    %v1151 = vunpack.c.h.b16 %v421
    %v1152 = vunpack.c.l.b16 %v422
    %v1153 = vunpack.c.h.b16 %v422
    %v1154 = vunpack.c.l.b16 %v423
    %v1155 = vunpack.c.h.b16 %v423
    %v1156 = vunpack.c.l.b16 %v424
    %v1157 = vunpack.c.h.b16 %v424
    %v1158 = vunpack.c.l.b16 %v425
    %v1159 = vunpack.c.h.b16 %v425
    %v1160 = vunpack.c.l.b16 %v426
    %v1161 = vunpack.c.h.b16 %v426
    %v1162 = vunpack.c.l.b16 %v427
    %v1163 = vunpack.c.h.b16 %v427
    %v1164 = vunpack.c.l.b16 %v428
    %v1165 = vunpack.c.h.b16 %v428
    %v1166 = vunpack.c.l.b16 %v429
    %v1167 = vunpack.c.h.b16 %v429
    %v1168 = vunpack.c.l.b16 %v430
    %v1169 = vunpack.c.h.b16 %v430
    %v1170 = vunpack.c.l.b16 %v431
    %v1171 = vunpack.c.h.b16 %v431
    %v1172 = vunpack.c.l.b16 %v432
    %v1173 = vunpack.c.h.b16 %v432
    %v1174 = vunpack.c.l.b16 %v433
    %v1175 = vunpack.c.h.b16 %v433
    %v1176 = vunpack.c.l.b16 %v434
    %v1177 = vunpack.c.h.b16 %v434
    %v1178 = vunpack.c.l.b16 %v435
    %v1179 = vunpack.c.h.b16 %v435
    %v1180 = vunpack.c.l.b16 %v436
    %v1181 = vunpack.c.h.b16 %v436
    %v1182 = vunpack.c.l.b16 %v437
    %v1183 = vunpack.c.h.b16 %v437
    %v1184 = vunpack.c.l.b16 %v438
    %v1185 = vunpack.c.h.b16 %v438
    %v1186 = vunpack.c.l.b16 %v439
    %v1187 = vunpack.c.h.b16 %v439
    %v1188 = vunpack.c.l.b16 %v440
    %v1189 = vunpack.c.h.b16 %v440
    %v1190 = vunpack.c.l.b16 %v441
    %v1191 = vunpack.c.h.b16 %v441
    %v1192 = vunpack.c.l.b16 %v442
    %v1193 = vunpack.c.h.b16 %v442
    %v1194 = vunpack.c.l.b16 %v443
    %v1195 = vunpack.c.h.b16 %v443
    %v1196 = vunpack.c.l.b16 %v444
    %v1197 = vunpack.c.h.b16 %v444
    %v1198 = vunpack.c.l.b16 %v445
    %v1199 = vunpack.c.h.b16 %v445
    %v1200 = vunpack.c.l.b16 %v446
    %v1201 = vunpack.c.h.b16 %v446
    %v1202 = vunpack.c.l.b16 %v447
    %v1203 = vunpack.c.h.b16 %v447
    %v1204 = vunpack.c.l.b16 %v448
    %v1205 = vunpack.c.h.b16 %v448
    %v1206 = vunpack.c.l.b16 %v449
    %v1207 = vunpack.c.h.b16 %v449
    %v1208 = vunpack.c.l.b16 %v450
    %v1209 = vunpack.c.h.b16 %v450
    %v1210 = vunpack.c.l.b16 %v451
    %v1211 = vunpack.c.h.b16 %v451
    %v1212 = vunpack.c.l.b16 %v452
    %v1213 = vunpack.c.h.b16 %v452
    %v1214 = vunpack.c.l.b16 %v453
    %v1215 = vunpack.c.h.b16 %v453
    %v1216 = vunpack.c.l.b16 %v454
    %v1217 = vunpack.c.h.b16 %v454
    %v1218 = vunpack.c.l.b16 %v455
    %v1219 = vunpack.c.h.b16 %v455
    %v1220 = vunpack.c.l.b16 %v456
    %v1221 = vunpack.c.h.b16 %v456
    %v1222 = vunpack.c.l.b16 %v457
    %v1223 = vunpack.c.h.b16 %v457
    %v1224 = vunpack.c.l.b16 %v458
    %v1225 = vunpack.c.h.b16 %v458
    %v1226 = vunpack.c.l.b16 %v459
    %v1227 = vunpack.c.h.b16 %v459
    %v1228 = vunpack.c.l.b16 %v460
    %v1229 = vunpack.c.h.b16 %v460
    %v1230 = vunpack.c.l.b16 %v461
    %v1231 = vunpack.c.h.b16 %v461
    %v1232 = vunpack.c.l.b16 %v462
    %v1233 = vunpack.c.h.b16 %v462
    %v1234 = vunpack.c.l.b16 %v463
    %v1235 = vunpack.c.h.b16 %v463
    %v1236 = vunpack.c.l.b16 %v464
    %v1237 = vunpack.c.h.b16 %v464
    %v1238 = vunpack.c.l.b16 %v465
    %v1239 = vunpack.c.h.b16 %v465
    %v1240 = vunpack.c.l.b16 %v466
    %v1241 = vunpack.c.h.b16 %v466
    %v1242 = vunpack.c.l.b16 %v467
    %v1243 = vunpack.c.h.b16 %v467
    %v1244 = vunpack.c.l.b16 %v468
    %v1245 = vunpack.c.h.b16 %v468
    %v1246 = vunpack.c.l.b16 %v469
    %v1247 = vunpack.c.h.b16 %v469
    %v1248 = vpack.c.b16 %v740, %v736
    %v1249 = vpack.c.b16 %v741, %v737
    %v1250 = vpack.c.b16 %v742, %v738
    %v1251 = vpack.c.b16 %v743, %v739
    %v1252 = vpack.c.b16 %v748, %v744
    %v1253 = vpack.c.b16 %v749, %v745
    %v1254 = vpack.c.b16 %v750, %v746
    %v1255 = vpack.c.b16 %v751, %v747
    %v1256 = vpack.c.b16 %v756, %v752
    %v1257 = vpack.c.b16 %v757, %v753
    %v1258 = vpack.c.b16 %v758, %v754
    %v1259 = vpack.c.b16 %v759, %v755
    %v1260 = vpack.c.b16 %v764, %v760
    %v1261 = vpack.c.b16 %v765, %v761
    %v1262 = vpack.c.b16 %v766, %v762
    %v1263 = vpack.c.b16 %v767, %v763
    %v1264 = vpack.c.b16 %v772, %v768
    %v1265 = vpack.c.b16 %v773, %v769
    %v1266 = vpack.c.b16 %v774, %v770
    %v1267 = vpack.c.b16 %v775, %v771
    %v1268 = vpack.c.b16 %v780, %v776
    %v1269 = vpack.c.b16 %v781, %v777
    %v1270 = vpack.c.b16 %v782, %v778
    %v1271 = vpack.c.b16 %v783, %v779
    %v1272 = vpack.c.b16 %v788, %v784
    %v1273 = vpack.c.b16 %v789, %v785
    %v1274 = vpack.c.b16 %v790, %v786
    %v1275 = vpack.c.b16 %v791, %v787
    %v1276 = vpack.c.b16 %v796, %v792
    %v1277 = vpack.c.b16 %v797, %v793
    %v1278 = vpack.c.b16 %v798, %v794
    %v1279 = vpack.c.b16 %v799, %v795
    %v1280 = vpack.c.b16 %v804, %v800
    %v1281 = vpack.c.b16 %v805, %v801
    %v1282 = vpack.c.b16 %v806, %v802
    %v1283 = vpack.c.b16 %v807, %v803
    %v1284 = vpack.c.b16 %v812, %v808
    %v1285 = vpack.c.b16 %v813, %v809
    %v1286 = vpack.c.b16 %v814, %v810
    %v1287 = vpack.c.b16 %v815, %v811
    %v1288 = vpack.c.b16 %v820, %v816
    %v1289 = vpack.c.b16 %v821, %v817
    %v1290 = vpack.c.b16 %v822, %v818
    %v1291 = vpack.c.b16 %v823, %v819
    %v1292 = vpack.c.b16 %v828, %v824
    %v1293 = vpack.c.b16 %v829, %v825
    %v1294 = vpack.c.b16 %v830, %v826
    %v1295 = vpack.c.b16 %v831, %v827
    %v1296 = vpack.c.b16 %v836, %v832
    %v1297 = vpack.c.b16 %v837, %v833
    %v1298 = vpack.c.b16 %v838, %v834
    %v1299 = vpack.c.b16 %v839, %v835
    %v1300 = vpack.c.b16 %v844, %v840
    %v1301 = vpack.c.b16 %v845, %v841
    %v1302 = vpack.c.b16 %v846, %v842
    %v1303 = vpack.c.b16 %v847, %v843
    %v1304 = vpack.c.b16 %v852, %v848
    %v1305 = vpack.c.b16 %v853, %v849
    %v1306 = vpack.c.b16 %v854, %v850
    %v1307 = vpack.c.b16 %v855, %v851
    %v1308 = vpack.c.b16 %v860, %v856
    %v1309 = vpack.c.b16 %v861, %v857
    %v1310 = vpack.c.b16 %v862, %v858
    %v1311 = vpack.c.b16 %v863, %v859
    %v1312 = vpack.c.b16 %v868, %v864
    %v1313 = vpack.c.b16 %v869, %v865
    %v1314 = vpack.c.b16 %v870, %v866
    %v1315 = vpack.c.b16 %v871, %v867
    %v1316 = vpack.c.b16 %v876, %v872
    %v1317 = vpack.c.b16 %v877, %v873
    %v1318 = vpack.c.b16 %v878, %v874
    %v1319 = vpack.c.b16 %v879, %v875
    %v1320 = vpack.c.b16 %v884, %v880
    %v1321 = vpack.c.b16 %v885, %v881
    %v1322 = vpack.c.b16 %v886, %v882
    %v1323 = vpack.c.b16 %v887, %v883
    %v1324 = vpack.c.b16 %v892, %v888
    %v1325 = vpack.c.b16 %v893, %v889
    %v1326 = vpack.c.b16 %v894, %v890
    %v1327 = vpack.c.b16 %v895, %v891
    %v1328 = vpack.c.b16 %v900, %v896
    %v1329 = vpack.c.b16 %v901, %v897
    %v1330 = vpack.c.b16 %v902, %v898
    %v1331 = vpack.c.b16 %v903, %v899
    %v1332 = vpack.c.b16 %v908, %v904
    %v1333 = vpack.c.b16 %v909, %v905
    %v1334 = vpack.c.b16 %v910, %v906
    %v1335 = vpack.c.b16 %v911, %v907
    %v1336 = vpack.c.b16 %v916, %v912
    %v1337 = vpack.c.b16 %v917, %v913
    %v1338 = vpack.c.b16 %v918, %v914
    %v1339 = vpack.c.b16 %v919, %v915
    %v1340 = vpack.c.b16 %v924, %v920
    %v1341 = vpack.c.b16 %v925, %v921
    %v1342 = vpack.c.b16 %v926, %v922
    %v1343 = vpack.c.b16 %v927, %v923
    %v1344 = vpack.c.b16 %v932, %v928
    %v1345 = vpack.c.b16 %v933, %v929
    %v1346 = vpack.c.b16 %v934, %v930
    %v1347 = vpack.c.b16 %v935, %v931
    %v1348 = vpack.c.b16 %v940, %v936
    %v1349 = vpack.c.b16 %v941, %v937
    %v1350 = vpack.c.b16 %v942, %v938
    %v1351 = vpack.c.b16 %v943, %v939
    %v1352 = vpack.c.b16 %v948, %v944
    %v1353 = vpack.c.b16 %v949, %v945
    %v1354 = vpack.c.b16 %v950, %v946
    %v1355 = vpack.c.b16 %v951, %v947
    %v1356 = vpack.c.b16 %v956, %v952
    %v1357 = vpack.c.b16 %v957, %v953
    %v1358 = vpack.c.b16 %v958, %v954
    %v1359 = vpack.c.b16 %v959, %v955
    %v1360 = vpack.c.b16 %v964, %v960
    %v1361 = vpack.c.b16 %v965, %v961
    %v1362 = vpack.c.b16 %v966, %v962
    %v1363 = vpack.c.b16 %v967, %v963
    %v1364 = vpack.c.b16 %v972, %v968
    %v1365 = vpack.c.b16 %v973, %v969
    %v1366 = vpack.c.b16 %v974, %v970
    %v1367 = vpack.c.b16 %v975, %v971
    %v1368 = vpack.c.b16 %v980, %v976
    %v1369 = vpack.c.b16 %v981, %v977
    %v1370 = vpack.c.b16 %v982, %v978
    %v1371 = vpack.c.b16 %v983, %v979
    %v1372 = vpack.c.b16 %v988, %v984
    %v1373 = vpack.c.b16 %v989, %v985
    %v1374 = vpack.c.b16 %v990, %v986
    %v1375 = vpack.c.b16 %v991, %v987
    %v1376 = vpack.c.b16 %v996, %v992
    %v1377 = vpack.c.b16 %v997, %v993
    %v1378 = vpack.c.b16 %v998, %v994
    %v1379 = vpack.c.b16 %v999, %v995
    %v1380 = vpack.c.b16 %v1004, %v1000
    %v1381 = vpack.c.b16 %v1005, %v1001
    %v1382 = vpack.c.b16 %v1006, %v1002
    %v1383 = vpack.c.b16 %v1007, %v1003
    %v1384 = vpack.c.b16 %v1012, %v1008
    %v1385 = vpack.c.b16 %v1013, %v1009
    %v1386 = vpack.c.b16 %v1014, %v1010
    %v1387 = vpack.c.b16 %v1015, %v1011
    %v1388 = vpack.c.b16 %v1020, %v1016
    %v1389 = vpack.c.b16 %v1021, %v1017
    %v1390 = vpack.c.b16 %v1022, %v1018
    %v1391 = vpack.c.b16 %v1023, %v1019
    %v1392 = vpack.c.b16 %v1028, %v1024
    %v1393 = vpack.c.b16 %v1029, %v1025
    %v1394 = vpack.c.b16 %v1030, %v1026
    %v1395 = vpack.c.b16 %v1031, %v1027
    %v1396 = vpack.c.b16 %v1036, %v1032
    %v1397 = vpack.c.b16 %v1037, %v1033
    %v1398 = vpack.c.b16 %v1038, %v1034
    %v1399 = vpack.c.b16 %v1039, %v1035
    %v1400 = vpack.c.b16 %v1044, %v1040
    %v1401 = vpack.c.b16 %v1045, %v1041
    %v1402 = vpack.c.b16 %v1046, %v1042
    %v1403 = vpack.c.b16 %v1047, %v1043
    %v1404 = vpack.c.b16 %v1052, %v1048
    %v1405 = vpack.c.b16 %v1053, %v1049
    %v1406 = vpack.c.b16 %v1054, %v1050
    %v1407 = vpack.c.b16 %v1055, %v1051
    %v1408 = vpack.c.b16 %v1060, %v1056
    %v1409 = vpack.c.b16 %v1061, %v1057
    %v1410 = vpack.c.b16 %v1062, %v1058
    %v1411 = vpack.c.b16 %v1063, %v1059
    %v1412 = vpack.c.b16 %v1068, %v1064
    %v1413 = vpack.c.b16 %v1069, %v1065
    %v1414 = vpack.c.b16 %v1070, %v1066
    %v1415 = vpack.c.b16 %v1071, %v1067
    %v1416 = vpack.c.b16 %v1076, %v1072
    %v1417 = vpack.c.b16 %v1077, %v1073
    %v1418 = vpack.c.b16 %v1078, %v1074
    %v1419 = vpack.c.b16 %v1079, %v1075
    %v1420 = vpack.c.b16 %v1084, %v1080
    %v1421 = vpack.c.b16 %v1085, %v1081
    %v1422 = vpack.c.b16 %v1086, %v1082
    %v1423 = vpack.c.b16 %v1087, %v1083
    %v1424 = vpack.c.b16 %v1092, %v1088
    %v1425 = vpack.c.b16 %v1093, %v1089
    %v1426 = vpack.c.b16 %v1094, %v1090
    %v1427 = vpack.c.b16 %v1095, %v1091
    %v1428 = vpack.c.b16 %v1100, %v1096
    %v1429 = vpack.c.b16 %v1101, %v1097
    %v1430 = vpack.c.b16 %v1102, %v1098
    %v1431 = vpack.c.b16 %v1103, %v1099
    %v1432 = vpack.c.b16 %v1108, %v1104
    %v1433 = vpack.c.b16 %v1109, %v1105
    %v1434 = vpack.c.b16 %v1110, %v1106
    %v1435 = vpack.c.b16 %v1111, %v1107
    %v1436 = vpack.c.b16 %v1116, %v1112
    %v1437 = vpack.c.b16 %v1117, %v1113
    %v1438 = vpack.c.b16 %v1118, %v1114
    %v1439 = vpack.c.b16 %v1119, %v1115
    %v1440 = vpack.c.b16 %v1124, %v1120
    %v1441 = vpack.c.b16 %v1125, %v1121
    %v1442 = vpack.c.b16 %v1126, %v1122
    %v1443 = vpack.c.b16 %v1127, %v1123
    %v1444 = vpack.c.b16 %v1132, %v1128
    %v1445 = vpack.c.b16 %v1133, %v1129
    %v1446 = vpack.c.b16 %v1134, %v1130
    %v1447 = vpack.c.b16 %v1135, %v1131
    %v1448 = vpack.c.b16 %v1140, %v1136
    %v1449 = vpack.c.b16 %v1141, %v1137
    %v1450 = vpack.c.b16 %v1142, %v1138
    %v1451 = vpack.c.b16 %v1143, %v1139
    %v1452 = vpack.c.b16 %v1148, %v1144
    %v1453 = vpack.c.b16 %v1149, %v1145
    %v1454 = vpack.c.b16 %v1150, %v1146
    %v1455 = vpack.c.b16 %v1151, %v1147
    %v1456 = vpack.c.b16 %v1156, %v1152
    %v1457 = vpack.c.b16 %v1157, %v1153
    %v1458 = vpack.c.b16 %v1158, %v1154
    %v1459 = vpack.c.b16 %v1159, %v1155
    %v1460 = vpack.c.b16 %v1164, %v1160
    %v1461 = vpack.c.b16 %v1165, %v1161
    %v1462 = vpack.c.b16 %v1166, %v1162
    %v1463 = vpack.c.b16 %v1167, %v1163
    %v1464 = vpack.c.b16 %v1172, %v1168
    %v1465 = vpack.c.b16 %v1173, %v1169
    %v1466 = vpack.c.b16 %v1174, %v1170
    %v1467 = vpack.c.b16 %v1175, %v1171
    %v1468 = vpack.c.b16 %v1180, %v1176
    %v1469 = vpack.c.b16 %v1181, %v1177
    %v1470 = vpack.c.b16 %v1182, %v1178
    %v1471 = vpack.c.b16 %v1183, %v1179
    %v1472 = vpack.c.b16 %v1188, %v1184
    %v1473 = vpack.c.b16 %v1189, %v1185
    %v1474 = vpack.c.b16 %v1190, %v1186
    %v1475 = vpack.c.b16 %v1191, %v1187
    %v1476 = vpack.c.b16 %v1196, %v1192
    %v1477 = vpack.c.b16 %v1197, %v1193
    %v1478 = vpack.c.b16 %v1198, %v1194
    %v1479 = vpack.c.b16 %v1199, %v1195
    %v1480 = vpack.c.b16 %v1204, %v1200
    %v1481 = vpack.c.b16 %v1205, %v1201
    %v1482 = vpack.c.b16 %v1206, %v1202
    %v1483 = vpack.c.b16 %v1207, %v1203
    %v1484 = vpack.c.b16 %v1212, %v1208
    %v1485 = vpack.c.b16 %v1213, %v1209
    %v1486 = vpack.c.b16 %v1214, %v1210
    %v1487 = vpack.c.b16 %v1215, %v1211
    %v1488 = vpack.c.b16 %v1220, %v1216
    %v1489 = vpack.c.b16 %v1221, %v1217
    %v1490 = vpack.c.b16 %v1222, %v1218
    %v1491 = vpack.c.b16 %v1223, %v1219
    %v1492 = vpack.c.b16 %v1228, %v1224
    %v1493 = vpack.c.b16 %v1229, %v1225
    %v1494 = vpack.c.b16 %v1230, %v1226
    %v1495 = vpack.c.b16 %v1231, %v1227
    %v1496 = vpack.c.b16 %v1236, %v1232
    %v1497 = vpack.c.b16 %v1237, %v1233
    %v1498 = vpack.c.b16 %v1238, %v1234
    %v1499 = vpack.c.b16 %v1239, %v1235
    %v1500 = vpack.c.b16 %v1244, %v1240
    %v1501 = vpack.c.b16 %v1245, %v1241
    %v1502 = vpack.c.b16 %v1246, %v1242
    %v1503 = vpack.c.b16 %v1247, %v1243
    %1760 = vmatpush.bf16.msra.mxu0 %v1276
    %1761 = vmatpush.bf16.msra.mxu0 %v1272
    %1762 = vmatpush.bf16.msra.mxu0 %v1268
    %1763 = vmatpush.bf16.msra.mxu0 %v1264
    %1764 = vmatpush.bf16.msra.mxu0 %v1260
    %1765 = vmatpush.bf16.msra.mxu0 %v1256
    %1766 = vmatpush.bf16.msra.mxu0 %v1252
    %1767 = vmatpush.bf16.msra.mxu0 %v1248
    %1768 = vmatmul.bf16.gmra.mxu0 %v206
    %v1769 = vpop.f32.mrf.mxu0
    %v1770 = vadd.f32 %v472, %v1769
    %v1771 = vpop.f32.mrf.mxu0
    %1772 = vdwg.mxu0
    %1773 = vmatpush.bf16.msra.mxu0 %v1308
    %1774 = vmatpush.bf16.msra.mxu0 %v1304
    %1775 = vmatpush.bf16.msra.mxu0 %v1300
    %1776 = vmatpush.bf16.msra.mxu0 %v1296
    %1777 = vmatpush.bf16.msra.mxu0 %v1292
    %1778 = vmatpush.bf16.msra.mxu0 %v1288
    %1779 = vmatpush.bf16.msra.mxu0 %v1284
    %1780 = vmatpush.bf16.msra.mxu0 %v1280
    %1781 = vmatmul.bf16.gmra.mxu0 %v207
    %v1782 = vpop.f32.mrf.mxu0
    %v1783 = vadd.f32 %v1770, %v1782
    %v1784 = vpop.f32.mrf.mxu0
    %1785 = vdwg.mxu0
    %1786 = vmatpush.bf16.msra.mxu0 %v1340
    %1787 = vmatpush.bf16.msra.mxu0 %v1336
    %1788 = vmatpush.bf16.msra.mxu0 %v1332
    %1789 = vmatpush.bf16.msra.mxu0 %v1328
    %1790 = vmatpush.bf16.msra.mxu0 %v1324
    %1791 = vmatpush.bf16.msra.mxu0 %v1320
    %1792 = vmatpush.bf16.msra.mxu0 %v1316
    %1793 = vmatpush.bf16.msra.mxu0 %v1312
    %1794 = vmatmul.bf16.gmra.mxu0 %v208
    %v1795 = vpop.f32.mrf.mxu0
    %v1796 = vadd.f32 %v1783, %v1795
    %v1797 = vpop.f32.mrf.mxu0
    %1798 = vdwg.mxu0
    %1799 = vmatpush.bf16.msra.mxu0 %v1372
    %1800 = vmatpush.bf16.msra.mxu0 %v1368
    %1801 = vmatpush.bf16.msra.mxu0 %v1364
    %1802 = vmatpush.bf16.msra.mxu0 %v1360
    %1803 = vmatpush.bf16.msra.mxu0 %v1356
    %1804 = vmatpush.bf16.msra.mxu0 %v1352
    %1805 = vmatpush.bf16.msra.mxu0 %v1348
    %1806 = vmatpush.bf16.msra.mxu0 %v1344
    %1807 = vmatmul.bf16.gmra.mxu0 %v209
    %v1808 = vpop.f32.mrf.mxu0
    %v1809 = vadd.f32 %v1796, %v1808
    %v1810 = vpop.f32.mrf.mxu0
    %1811 = vdwg.mxu0
    %1812 = vmatpush.bf16.msra.mxu0 %v1404
    %1813 = vmatpush.bf16.msra.mxu0 %v1400
    %1814 = vmatpush.bf16.msra.mxu0 %v1396
    %1815 = vmatpush.bf16.msra.mxu0 %v1392
    %1816 = vmatpush.bf16.msra.mxu0 %v1388
    %1817 = vmatpush.bf16.msra.mxu0 %v1384
    %1818 = vmatpush.bf16.msra.mxu0 %v1380
    %1819 = vmatpush.bf16.msra.mxu0 %v1376
    %1820 = vmatmul.bf16.gmra.mxu0 %v210
    %v1821 = vpop.f32.mrf.mxu0
    %v1822 = vadd.f32 %v1809, %v1821
    %v1823 = vpop.f32.mrf.mxu0
    %1824 = vdwg.mxu0
    %1825 = vmatpush.bf16.msra.mxu0 %v1436
    %1826 = vmatpush.bf16.msra.mxu0 %v1432
    %1827 = vmatpush.bf16.msra.mxu0 %v1428
    %1828 = vmatpush.bf16.msra.mxu0 %v1424
    %1829 = vmatpush.bf16.msra.mxu0 %v1420
    %1830 = vmatpush.bf16.msra.mxu0 %v1416
    %1831 = vmatpush.bf16.msra.mxu0 %v1412
    %1832 = vmatpush.bf16.msra.mxu0 %v1408
    %1833 = vmatmul.bf16.gmra.mxu0 %v211
    %v1834 = vpop.f32.mrf.mxu0
    %v1835 = vadd.f32 %v1822, %v1834
    %v1836 = vpop.f32.mrf.mxu0
    %1837 = vdwg.mxu0
    %1838 = vmatpush.bf16.msra.mxu0 %v1468
    %1839 = vmatpush.bf16.msra.mxu0 %v1464
    %1840 = vmatpush.bf16.msra.mxu0 %v1460
    %1841 = vmatpush.bf16.msra.mxu0 %v1456
    %1842 = vmatpush.bf16.msra.mxu0 %v1452
    %1843 = vmatpush.bf16.msra.mxu0 %v1448
    %1844 = vmatpush.bf16.msra.mxu0 %v1444
    %1845 = vmatpush.bf16.msra.mxu0 %v1440
    %1846 = vmatmul.bf16.gmra.mxu0 %v212
    %v1847 = vpop.f32.mrf.mxu0
    %v1848 = vadd.f32 %v1835, %v1847
    %v1849 = vpop.f32.mrf.mxu0
    %1850 = vdwg.mxu0
    %1851 = vmatpush.bf16.msra.mxu0 %v1500
    %1852 = vmatpush.bf16.msra.mxu0 %v1496
    %1853 = vmatpush.bf16.msra.mxu0 %v1492
    %1854 = vmatpush.bf16.msra.mxu0 %v1488
    %1855 = vmatpush.bf16.msra.mxu0 %v1484
    %1856 = vmatpush.bf16.msra.mxu0 %v1480
    %1857 = vmatpush.bf16.msra.mxu0 %v1476
    %1858 = vmatpush.bf16.msra.mxu0 %v1472
    %1859 = vmatmul.bf16.gmra.mxu0 %v213
    %v1860 = vpop.f32.mrf.mxu0
    %v1861 = vadd.f32 %v1848, %v1860
    %v1862 = vpop.f32.mrf.mxu0
    %1863 = vdwg.mxu0
    %1864 = vmatpush.bf16.msra.mxu0 %v1277
    %1865 = vmatpush.bf16.msra.mxu0 %v1273
    %1866 = vmatpush.bf16.msra.mxu0 %v1269
    %1867 = vmatpush.bf16.msra.mxu0 %v1265
    %1868 = vmatpush.bf16.msra.mxu0 %v1261
    %1869 = vmatpush.bf16.msra.mxu0 %v1257
    %1870 = vmatpush.bf16.msra.mxu0 %v1253
    %1871 = vmatpush.bf16.msra.mxu0 %v1249
    %1872 = vmatmul.bf16.gmra.mxu0 %v206
    %v1873 = vpop.f32.mrf.mxu0
    %v1874 = vadd.f32 %v473, %v1873
    %v1875 = vpop.f32.mrf.mxu0
    %1876 = vdwg.mxu0
    %1877 = vmatpush.bf16.msra.mxu0 %v1309
    %1878 = vmatpush.bf16.msra.mxu0 %v1305
    %1879 = vmatpush.bf16.msra.mxu0 %v1301
    %1880 = vmatpush.bf16.msra.mxu0 %v1297
    %1881 = vmatpush.bf16.msra.mxu0 %v1293
    %1882 = vmatpush.bf16.msra.mxu0 %v1289
    %1883 = vmatpush.bf16.msra.mxu0 %v1285
    %1884 = vmatpush.bf16.msra.mxu0 %v1281
    %1885 = vmatmul.bf16.gmra.mxu0 %v207
    %v1886 = vpop.f32.mrf.mxu0
    %v1887 = vadd.f32 %v1874, %v1886
    %v1888 = vpop.f32.mrf.mxu0
    %1889 = vdwg.mxu0
    %1890 = vmatpush.bf16.msra.mxu0 %v1341
    %1891 = vmatpush.bf16.msra.mxu0 %v1337
    %1892 = vmatpush.bf16.msra.mxu0 %v1333
    %1893 = vmatpush.bf16.msra.mxu0 %v1329
    %1894 = vmatpush.bf16.msra.mxu0 %v1325
    %1895 = vmatpush.bf16.msra.mxu0 %v1321
    %1896 = vmatpush.bf16.msra.mxu0 %v1317
    %1897 = vmatpush.bf16.msra.mxu0 %v1313
    %1898 = vmatmul.bf16.gmra.mxu0 %v208
    %v1899 = vpop.f32.mrf.mxu0
    %v1900 = vadd.f32 %v1887, %v1899
    %v1901 = vpop.f32.mrf.mxu0
    %1902 = vdwg.mxu0
    %1903 = vmatpush.bf16.msra.mxu0 %v1373
    %1904 = vmatpush.bf16.msra.mxu0 %v1369
    %1905 = vmatpush.bf16.msra.mxu0 %v1365
    %1906 = vmatpush.bf16.msra.mxu0 %v1361
    %1907 = vmatpush.bf16.msra.mxu0 %v1357
    %1908 = vmatpush.bf16.msra.mxu0 %v1353
    %1909 = vmatpush.bf16.msra.mxu0 %v1349
    %1910 = vmatpush.bf16.msra.mxu0 %v1345
    %1911 = vmatmul.bf16.gmra.mxu0 %v209
    %v1912 = vpop.f32.mrf.mxu0
    %v1913 = vadd.f32 %v1900, %v1912
    %v1914 = vpop.f32.mrf.mxu0
    %1915 = vdwg.mxu0
    %1916 = vmatpush.bf16.msra.mxu0 %v1405
    %1917 = vmatpush.bf16.msra.mxu0 %v1401
    %1918 = vmatpush.bf16.msra.mxu0 %v1397
    %1919 = vmatpush.bf16.msra.mxu0 %v1393
    %1920 = vmatpush.bf16.msra.mxu0 %v1389
    %1921 = vmatpush.bf16.msra.mxu0 %v1385
    %1922 = vmatpush.bf16.msra.mxu0 %v1381
    %1923 = vmatpush.bf16.msra.mxu0 %v1377
    %1924 = vmatmul.bf16.gmra.mxu0 %v210
    %v1925 = vpop.f32.mrf.mxu0
    %v1926 = vadd.f32 %v1913, %v1925
    %v1927 = vpop.f32.mrf.mxu0
    %1928 = vdwg.mxu0
    %1929 = vmatpush.bf16.msra.mxu0 %v1437
    %1930 = vmatpush.bf16.msra.mxu0 %v1433
    %1931 = vmatpush.bf16.msra.mxu0 %v1429
    %1932 = vmatpush.bf16.msra.mxu0 %v1425
    %1933 = vmatpush.bf16.msra.mxu0 %v1421
    %1934 = vmatpush.bf16.msra.mxu0 %v1417
    %1935 = vmatpush.bf16.msra.mxu0 %v1413
    %1936 = vmatpush.bf16.msra.mxu0 %v1409
    %1937 = vmatmul.bf16.gmra.mxu0 %v211
    %v1938 = vpop.f32.mrf.mxu0
    %v1939 = vadd.f32 %v1926, %v1938
    %v1940 = vpop.f32.mrf.mxu0
    %1941 = vdwg.mxu0
    %1942 = vmatpush.bf16.msra.mxu0 %v1469
    %1943 = vmatpush.bf16.msra.mxu0 %v1465
    %1944 = vmatpush.bf16.msra.mxu0 %v1461
    %1945 = vmatpush.bf16.msra.mxu0 %v1457
    %1946 = vmatpush.bf16.msra.mxu0 %v1453
    %1947 = vmatpush.bf16.msra.mxu0 %v1449
    %1948 = vmatpush.bf16.msra.mxu0 %v1445
    %1949 = vmatpush.bf16.msra.mxu0 %v1441
    %1950 = vmatmul.bf16.gmra.mxu0 %v212
    %v1951 = vpop.f32.mrf.mxu0
    %v1952 = vadd.f32 %v1939, %v1951
    %v1953 = vpop.f32.mrf.mxu0
    %1954 = vdwg.mxu0
    %1955 = vmatpush.bf16.msra.mxu0 %v1501
    %1956 = vmatpush.bf16.msra.mxu0 %v1497
    %1957 = vmatpush.bf16.msra.mxu0 %v1493
    %1958 = vmatpush.bf16.msra.mxu0 %v1489
    %1959 = vmatpush.bf16.msra.mxu0 %v1485
    %1960 = vmatpush.bf16.msra.mxu0 %v1481
    %1961 = vmatpush.bf16.msra.mxu0 %v1477
    %1962 = vmatpush.bf16.msra.mxu0 %v1473
    %1963 = vmatmul.bf16.gmra.mxu0 %v213
    %v1964 = vpop.f32.mrf.mxu0
    %v1965 = vadd.f32 %v1952, %v1964
    %v1966 = vpop.f32.mrf.mxu0
    %1967 = vdwg.mxu0
    %1968 = vmatpush.bf16.msra.mxu0 %v1278
    %1969 = vmatpush.bf16.msra.mxu0 %v1274
    %1970 = vmatpush.bf16.msra.mxu0 %v1270
    %1971 = vmatpush.bf16.msra.mxu0 %v1266
    %1972 = vmatpush.bf16.msra.mxu0 %v1262
    %1973 = vmatpush.bf16.msra.mxu0 %v1258
    %1974 = vmatpush.bf16.msra.mxu0 %v1254
    %1975 = vmatpush.bf16.msra.mxu0 %v1250
    %1976 = vmatmul.bf16.gmra.mxu0 %v206
    %v1977 = vpop.f32.mrf.mxu0
    %v1978 = vadd.f32 %v474, %v1977
    %v1979 = vpop.f32.mrf.mxu0
    %1980 = vdwg.mxu0
    %1981 = vmatpush.bf16.msra.mxu0 %v1310
    %1982 = vmatpush.bf16.msra.mxu0 %v1306
    %1983 = vmatpush.bf16.msra.mxu0 %v1302
    %1984 = vmatpush.bf16.msra.mxu0 %v1298
    %1985 = vmatpush.bf16.msra.mxu0 %v1294
    %1986 = vmatpush.bf16.msra.mxu0 %v1290
    %1987 = vmatpush.bf16.msra.mxu0 %v1286
    %1988 = vmatpush.bf16.msra.mxu0 %v1282
    %1989 = vmatmul.bf16.gmra.mxu0 %v207
    %v1990 = vpop.f32.mrf.mxu0
    %v1991 = vadd.f32 %v1978, %v1990
    %v1992 = vpop.f32.mrf.mxu0
    %1993 = vdwg.mxu0
    %1994 = vmatpush.bf16.msra.mxu0 %v1342
    %1995 = vmatpush.bf16.msra.mxu0 %v1338
    %1996 = vmatpush.bf16.msra.mxu0 %v1334
    %1997 = vmatpush.bf16.msra.mxu0 %v1330
    %1998 = vmatpush.bf16.msra.mxu0 %v1326
    %1999 = vmatpush.bf16.msra.mxu0 %v1322
    %2000 = vmatpush.bf16.msra.mxu0 %v1318
    %2001 = vmatpush.bf16.msra.mxu0 %v1314
    %2002 = vmatmul.bf16.gmra.mxu0 %v208
    %v2003 = vpop.f32.mrf.mxu0
    %v2004 = vadd.f32 %v1991, %v2003
    %v2005 = vpop.f32.mrf.mxu0
    %2006 = vdwg.mxu0
    %2007 = vmatpush.bf16.msra.mxu0 %v1374
    %2008 = vmatpush.bf16.msra.mxu0 %v1370
    %2009 = vmatpush.bf16.msra.mxu0 %v1366
    %2010 = vmatpush.bf16.msra.mxu0 %v1362
    %2011 = vmatpush.bf16.msra.mxu0 %v1358
    %2012 = vmatpush.bf16.msra.mxu0 %v1354
    %2013 = vmatpush.bf16.msra.mxu0 %v1350
    %2014 = vmatpush.bf16.msra.mxu0 %v1346
    %2015 = vmatmul.bf16.gmra.mxu0 %v209
    %v2016 = vpop.f32.mrf.mxu0
    %v2017 = vadd.f32 %v2004, %v2016
    %v2018 = vpop.f32.mrf.mxu0
    %2019 = vdwg.mxu0
    %2020 = vmatpush.bf16.msra.mxu0 %v1406
    %2021 = vmatpush.bf16.msra.mxu0 %v1402
    %2022 = vmatpush.bf16.msra.mxu0 %v1398
    %2023 = vmatpush.bf16.msra.mxu0 %v1394
    %2024 = vmatpush.bf16.msra.mxu0 %v1390
    %2025 = vmatpush.bf16.msra.mxu0 %v1386
    %2026 = vmatpush.bf16.msra.mxu0 %v1382
    %2027 = vmatpush.bf16.msra.mxu0 %v1378
    %2028 = vmatmul.bf16.gmra.mxu0 %v210
    %v2029 = vpop.f32.mrf.mxu0
    %v2030 = vadd.f32 %v2017, %v2029
    %v2031 = vpop.f32.mrf.mxu0
    %2032 = vdwg.mxu0
    %2033 = vmatpush.bf16.msra.mxu0 %v1438
    %2034 = vmatpush.bf16.msra.mxu0 %v1434
    %2035 = vmatpush.bf16.msra.mxu0 %v1430
    %2036 = vmatpush.bf16.msra.mxu0 %v1426
    %2037 = vmatpush.bf16.msra.mxu0 %v1422
    %2038 = vmatpush.bf16.msra.mxu0 %v1418
    %2039 = vmatpush.bf16.msra.mxu0 %v1414
    %2040 = vmatpush.bf16.msra.mxu0 %v1410
    %2041 = vmatmul.bf16.gmra.mxu0 %v211
    %v2042 = vpop.f32.mrf.mxu0
    %v2043 = vadd.f32 %v2030, %v2042
    %v2044 = vpop.f32.mrf.mxu0
    %2045 = vdwg.mxu0
    %2046 = vmatpush.bf16.msra.mxu0 %v1470
    %2047 = vmatpush.bf16.msra.mxu0 %v1466
    %2048 = vmatpush.bf16.msra.mxu0 %v1462
    %2049 = vmatpush.bf16.msra.mxu0 %v1458
    %2050 = vmatpush.bf16.msra.mxu0 %v1454
    %2051 = vmatpush.bf16.msra.mxu0 %v1450
    %2052 = vmatpush.bf16.msra.mxu0 %v1446
    %2053 = vmatpush.bf16.msra.mxu0 %v1442
    %2054 = vmatmul.bf16.gmra.mxu0 %v212
    %v2055 = vpop.f32.mrf.mxu0
    %v2056 = vadd.f32 %v2043, %v2055
    %v2057 = vpop.f32.mrf.mxu0
    %2058 = vdwg.mxu0
    %2059 = vmatpush.bf16.msra.mxu0 %v1502
    %2060 = vmatpush.bf16.msra.mxu0 %v1498
    %2061 = vmatpush.bf16.msra.mxu0 %v1494
    %2062 = vmatpush.bf16.msra.mxu0 %v1490
    %2063 = vmatpush.bf16.msra.mxu0 %v1486
    %2064 = vmatpush.bf16.msra.mxu0 %v1482
    %2065 = vmatpush.bf16.msra.mxu0 %v1478
    %2066 = vmatpush.bf16.msra.mxu0 %v1474
    %2067 = vmatmul.bf16.gmra.mxu0 %v213
    %v2068 = vpop.f32.mrf.mxu0
    %v2069 = vadd.f32 %v2056, %v2068
    %v2070 = vpop.f32.mrf.mxu0
    %2071 = vdwg.mxu0
    %2072 = vmatpush.bf16.msra.mxu0 %v1279
    %2073 = vmatpush.bf16.msra.mxu0 %v1275
    %2074 = vmatpush.bf16.msra.mxu0 %v1271
    %2075 = vmatpush.bf16.msra.mxu0 %v1267
    %2076 = vmatpush.bf16.msra.mxu0 %v1263
    %2077 = vmatpush.bf16.msra.mxu0 %v1259
    %2078 = vmatpush.bf16.msra.mxu0 %v1255
    %2079 = vmatpush.bf16.msra.mxu0 %v1251
    %2080 = vmatmul.bf16.gmra.mxu0 %v206
    %v2081 = vpop.f32.mrf.mxu0
    %v2082 = vadd.f32 %v475, %v2081
    %v2083 = vpop.f32.mrf.mxu0
    %2084 = vdwg.mxu0
    %2085 = vmatpush.bf16.msra.mxu0 %v1311
    %2086 = vmatpush.bf16.msra.mxu0 %v1307
    %2087 = vmatpush.bf16.msra.mxu0 %v1303
    %2088 = vmatpush.bf16.msra.mxu0 %v1299
    %2089 = vmatpush.bf16.msra.mxu0 %v1295
    %2090 = vmatpush.bf16.msra.mxu0 %v1291
    %2091 = vmatpush.bf16.msra.mxu0 %v1287
    %2092 = vmatpush.bf16.msra.mxu0 %v1283
    %2093 = vmatmul.bf16.gmra.mxu0 %v207
    %v2094 = vpop.f32.mrf.mxu0
    %v2095 = vadd.f32 %v2082, %v2094
    %v2096 = vpop.f32.mrf.mxu0
    %2097 = vdwg.mxu0
    %2098 = vmatpush.bf16.msra.mxu0 %v1343
    %2099 = vmatpush.bf16.msra.mxu0 %v1339
    %2100 = vmatpush.bf16.msra.mxu0 %v1335
    %2101 = vmatpush.bf16.msra.mxu0 %v1331
    %2102 = vmatpush.bf16.msra.mxu0 %v1327
    %2103 = vmatpush.bf16.msra.mxu0 %v1323
    %2104 = vmatpush.bf16.msra.mxu0 %v1319
    %2105 = vmatpush.bf16.msra.mxu0 %v1315
    %2106 = vmatmul.bf16.gmra.mxu0 %v208
    %v2107 = vpop.f32.mrf.mxu0
    %v2108 = vadd.f32 %v2095, %v2107
    %v2109 = vpop.f32.mrf.mxu0
    %2110 = vdwg.mxu0
    %2111 = vmatpush.bf16.msra.mxu0 %v1375
    %2112 = vmatpush.bf16.msra.mxu0 %v1371
    %2113 = vmatpush.bf16.msra.mxu0 %v1367
    %2114 = vmatpush.bf16.msra.mxu0 %v1363
    %2115 = vmatpush.bf16.msra.mxu0 %v1359
    %2116 = vmatpush.bf16.msra.mxu0 %v1355
    %2117 = vmatpush.bf16.msra.mxu0 %v1351
    %2118 = vmatpush.bf16.msra.mxu0 %v1347
    %2119 = vmatmul.bf16.gmra.mxu0 %v209
    %v2120 = vpop.f32.mrf.mxu0
    %v2121 = vadd.f32 %v2108, %v2120
    %v2122 = vpop.f32.mrf.mxu0
    %2123 = vdwg.mxu0
    %2124 = vmatpush.bf16.msra.mxu0 %v1407
    %2125 = vmatpush.bf16.msra.mxu0 %v1403
    %2126 = vmatpush.bf16.msra.mxu0 %v1399
    %2127 = vmatpush.bf16.msra.mxu0 %v1395
    %2128 = vmatpush.bf16.msra.mxu0 %v1391
    %2129 = vmatpush.bf16.msra.mxu0 %v1387
    %2130 = vmatpush.bf16.msra.mxu0 %v1383
    %2131 = vmatpush.bf16.msra.mxu0 %v1379
    %2132 = vmatmul.bf16.gmra.mxu0 %v210
    %v2133 = vpop.f32.mrf.mxu0
    %v2134 = vadd.f32 %v2121, %v2133
    %v2135 = vpop.f32.mrf.mxu0
    %2136 = vdwg.mxu0
    %2137 = vmatpush.bf16.msra.mxu0 %v1439
    %2138 = vmatpush.bf16.msra.mxu0 %v1435
    %2139 = vmatpush.bf16.msra.mxu0 %v1431
    %2140 = vmatpush.bf16.msra.mxu0 %v1427
    %2141 = vmatpush.bf16.msra.mxu0 %v1423
    %2142 = vmatpush.bf16.msra.mxu0 %v1419
    %2143 = vmatpush.bf16.msra.mxu0 %v1415
    %2144 = vmatpush.bf16.msra.mxu0 %v1411
    %2145 = vmatmul.bf16.gmra.mxu0 %v211
    %v2146 = vpop.f32.mrf.mxu0
    %v2147 = vadd.f32 %v2134, %v2146
    %v2148 = vpop.f32.mrf.mxu0
    %2149 = vdwg.mxu0
    %2150 = vmatpush.bf16.msra.mxu0 %v1471
    %2151 = vmatpush.bf16.msra.mxu0 %v1467
    %2152 = vmatpush.bf16.msra.mxu0 %v1463
    %2153 = vmatpush.bf16.msra.mxu0 %v1459
    %2154 = vmatpush.bf16.msra.mxu0 %v1455
    %2155 = vmatpush.bf16.msra.mxu0 %v1451
    %2156 = vmatpush.bf16.msra.mxu0 %v1447
    %2157 = vmatpush.bf16.msra.mxu0 %v1443
    %2158 = vmatmul.bf16.gmra.mxu0 %v212
    %v2159 = vpop.f32.mrf.mxu0
    %v2160 = vadd.f32 %v2147, %v2159
    %v2161 = vpop.f32.mrf.mxu0
    %2162 = vdwg.mxu0
    %2163 = vmatpush.bf16.msra.mxu0 %v1503
    %2164 = vmatpush.bf16.msra.mxu0 %v1499
    %2165 = vmatpush.bf16.msra.mxu0 %v1495
    %2166 = vmatpush.bf16.msra.mxu0 %v1491
    %2167 = vmatpush.bf16.msra.mxu0 %v1487
    %2168 = vmatpush.bf16.msra.mxu0 %v1483
    %2169 = vmatpush.bf16.msra.mxu0 %v1479
    %2170 = vmatpush.bf16.msra.mxu0 %v1475
    %2171 = vmatmul.bf16.gmra.mxu0 %v213
    %v2172 = vpop.f32.mrf.mxu0
    %v2173 = vadd.f32 %v2160, %v2172
    %v2174 = vpop.f32.mrf.mxu0
    %2175 = vdwg.mxu0
    %v2176 = vpack.c.bf16 %v1861, %v1861
    %v2177 = vpack.c.bf16 %v1965, %v1965
    %v2178 = vpack.c.bf16 %v2069, %v2069
    %v2179 = vpack.c.bf16 %v2173, %v2173
    %v2180 = vld [vmem:[#allocation7] sm:$0xff]
    %v2181 = vld [vmem:[#allocation7 + $0x8] sm:$0xff]
    %v2182 = vld [vmem:[#allocation7 + $0x10] sm:$0xff]
    %v2183 = vld [vmem:[#allocation7 + $0x18] sm:$0xff]
    %v2184 = vld [vmem:[#allocation7 + $0x20] sm:$0xff]
    %v2185 = vld [vmem:[#allocation7 + $0x28] sm:$0xff]
    %v2186 = vld [vmem:[#allocation7 + $0x30] sm:$0xff]
    %v2187 = vld [vmem:[#allocation7 + $0x38] sm:$0xff]
    %v2188 = vld [vmem:[#allocation7 + $0x40] sm:$0xff]
    %v2189 = vld [vmem:[#allocation7 + $0x48] sm:$0xff]
    %v2190 = vld [vmem:[#allocation7 + $0x50] sm:$0xff]
    %v2191 = vld [vmem:[#allocation7 + $0x58] sm:$0xff]
    %v2192 = vld [vmem:[#allocation7 + $0x60] sm:$0xff]
    %v2193 = vld [vmem:[#allocation7 + $0x68] sm:$0xff]
    %v2194 = vld [vmem:[#allocation7 + $0x70] sm:$0xff]
    %v2195 = vld [vmem:[#allocation7 + $0x78] sm:$0xff]
    %v2196 = vld [vmem:[#allocation7 + $0x80] sm:$0xff]
    %v2197 = vld [vmem:[#allocation7 + $0x88] sm:$0xff]
    %v2198 = vld [vmem:[#allocation7 + $0x90] sm:$0xff]
    %v2199 = vld [vmem:[#allocation7 + $0x98] sm:$0xff]
    %v2200 = vld [vmem:[#allocation7 + $0xa0] sm:$0xff]
    %v2201 = vld [vmem:[#allocation7 + $0xa8] sm:$0xff]
    %v2202 = vld [vmem:[#allocation7 + $0xb0] sm:$0xff]
    %v2203 = vld [vmem:[#allocation7 + $0xb8] sm:$0xff]
    %v2204 = vld [vmem:[#allocation7 + $0xc0] sm:$0xff]
    %v2205 = vld [vmem:[#allocation7 + $0xc8] sm:$0xff]
    %v2206 = vld [vmem:[#allocation7 + $0xd0] sm:$0xff]
    %v2207 = vld [vmem:[#allocation7 + $0xd8] sm:$0xff]
    %v2208 = vld [vmem:[#allocation7 + $0xe0] sm:$0xff]
    %v2209 = vld [vmem:[#allocation7 + $0xe8] sm:$0xff]
    %v2210 = vld [vmem:[#allocation7 + $0xf0] sm:$0xff]
    %v2211 = vld [vmem:[#allocation7 + $0xf8] sm:$0xff]
    %v2212 = vld [vmem:[#allocation7 + $0x100] sm:$0xff]
    %v2213 = vld [vmem:[#allocation7 + $0x108] sm:$0xff]
    %v2214 = vld [vmem:[#allocation7 + $0x110] sm:$0xff]
    %v2215 = vld [vmem:[#allocation7 + $0x118] sm:$0xff]
    %v2216 = vld [vmem:[#allocation7 + $0x120] sm:$0xff]
    %v2217 = vld [vmem:[#allocation7 + $0x128] sm:$0xff]
    %v2218 = vld [vmem:[#allocation7 + $0x130] sm:$0xff]
    %v2219 = vld [vmem:[#allocation7 + $0x138] sm:$0xff]
    %v2220 = vld [vmem:[#allocation7 + $0x140] sm:$0xff]
    %v2221 = vld [vmem:[#allocation7 + $0x148] sm:$0xff]
    %v2222 = vld [vmem:[#allocation7 + $0x150] sm:$0xff]
    %v2223 = vld [vmem:[#allocation7 + $0x158] sm:$0xff]
    %v2224 = vld [vmem:[#allocation7 + $0x160] sm:$0xff]
    %v2225 = vld [vmem:[#allocation7 + $0x168] sm:$0xff]
    %v2226 = vld [vmem:[#allocation7 + $0x170] sm:$0xff]
    %v2227 = vld [vmem:[#allocation7 + $0x178] sm:$0xff]
    %v2228 = vld [vmem:[#allocation7 + $0x180] sm:$0xff]
    %v2229 = vld [vmem:[#allocation7 + $0x188] sm:$0xff]
    %v2230 = vld [vmem:[#allocation7 + $0x190] sm:$0xff]
    %v2231 = vld [vmem:[#allocation7 + $0x198] sm:$0xff]
    %v2232 = vld [vmem:[#allocation7 + $0x1a0] sm:$0xff]
    %v2233 = vld [vmem:[#allocation7 + $0x1a8] sm:$0xff]
    %v2234 = vld [vmem:[#allocation7 + $0x1b0] sm:$0xff]
    %v2235 = vld [vmem:[#allocation7 + $0x1b8] sm:$0xff]
    %v2236 = vld [vmem:[#allocation7 + $0x1c0] sm:$0xff]
    %v2237 = vld [vmem:[#allocation7 + $0x1c8] sm:$0xff]
    %v2238 = vld [vmem:[#allocation7 + $0x1d0] sm:$0xff]
    %v2239 = vld [vmem:[#allocation7 + $0x1d8] sm:$0xff]
    %v2240 = vld [vmem:[#allocation7 + $0x1e0] sm:$0xff]
    %v2241 = vld [vmem:[#allocation7 + $0x1e8] sm:$0xff]
    %v2242 = vld [vmem:[#allocation7 + $0x1f0] sm:$0xff]
    %v2243 = vld [vmem:[#allocation7 + $0x1f8] sm:$0xff]
    %v2244 = vld [vmem:[%s6] sm:$0x3]
    %v2246 = vperm.slane %v2244, 0
    %v2247 = vperm.slane %v2244, 1
    %v2314 = vunpack.c.l.b16 %v2180
    %v2315 = vunpack.c.h.b16 %v2180
    %v2316 = vunpack.c.l.b16 %v2181
    %v2317 = vunpack.c.h.b16 %v2181
    %v2318 = vunpack.c.l.b16 %v2182
    %v2319 = vunpack.c.h.b16 %v2182
    %v2320 = vunpack.c.l.b16 %v2183
    %v2321 = vunpack.c.h.b16 %v2183
    %v2322 = vunpack.c.l.b16 %v2184
    %v2323 = vunpack.c.h.b16 %v2184
    %v2324 = vunpack.c.l.b16 %v2185
    %v2325 = vunpack.c.h.b16 %v2185
    %v2326 = vunpack.c.l.b16 %v2186
    %v2327 = vunpack.c.h.b16 %v2186
    %v2328 = vunpack.c.l.b16 %v2187
    %v2329 = vunpack.c.h.b16 %v2187
    %v2330 = vunpack.c.l.b16 %v2188
    %v2331 = vunpack.c.h.b16 %v2188
    %v2332 = vunpack.c.l.b16 %v2189
    %v2333 = vunpack.c.h.b16 %v2189
    %v2334 = vunpack.c.l.b16 %v2190
    %v2335 = vunpack.c.h.b16 %v2190
    %v2336 = vunpack.c.l.b16 %v2191
    %v2337 = vunpack.c.h.b16 %v2191
    %v2338 = vunpack.c.l.b16 %v2192
    %v2339 = vunpack.c.h.b16 %v2192
    %v2340 = vunpack.c.l.b16 %v2193
    %v2341 = vunpack.c.h.b16 %v2193
    %v2342 = vunpack.c.l.b16 %v2194
    %v2343 = vunpack.c.h.b16 %v2194
    %v2344 = vunpack.c.l.b16 %v2195
    %v2345 = vunpack.c.h.b16 %v2195
    %v2346 = vunpack.c.l.b16 %v2196
    %v2347 = vunpack.c.h.b16 %v2196
    %v2348 = vunpack.c.l.b16 %v2197
    %v2349 = vunpack.c.h.b16 %v2197
    %v2350 = vunpack.c.l.b16 %v2198
    %v2351 = vunpack.c.h.b16 %v2198
    %v2352 = vunpack.c.l.b16 %v2199
    %v2353 = vunpack.c.h.b16 %v2199
    %v2354 = vunpack.c.l.b16 %v2200
    %v2355 = vunpack.c.h.b16 %v2200
    %v2356 = vunpack.c.l.b16 %v2201
    %v2357 = vunpack.c.h.b16 %v2201
    %v2358 = vunpack.c.l.b16 %v2202
    %v2359 = vunpack.c.h.b16 %v2202
    %v2360 = vunpack.c.l.b16 %v2203
    %v2361 = vunpack.c.h.b16 %v2203
    %v2362 = vunpack.c.l.b16 %v2204
    %v2363 = vunpack.c.h.b16 %v2204
    %v2364 = vunpack.c.l.b16 %v2205
    %v2365 = vunpack.c.h.b16 %v2205
    %v2366 = vunpack.c.l.b16 %v2206
    %v2367 = vunpack.c.h.b16 %v2206
    %v2368 = vunpack.c.l.b16 %v2207
    %v2369 = vunpack.c.h.b16 %v2207
    %v2370 = vunpack.c.l.b16 %v2208
    %v2371 = vunpack.c.h.b16 %v2208
    %v2372 = vunpack.c.l.b16 %v2209
    %v2373 = vunpack.c.h.b16 %v2209
    %v2374 = vunpack.c.l.b16 %v2210
    %v2375 = vunpack.c.h.b16 %v2210
    %v2376 = vunpack.c.l.b16 %v2211
    %v2377 = vunpack.c.h.b16 %v2211
    %v2378 = vunpack.c.l.b16 %v2212
    %v2379 = vunpack.c.h.b16 %v2212
    %v2380 = vunpack.c.l.b16 %v2213
    %v2381 = vunpack.c.h.b16 %v2213
    %v2382 = vunpack.c.l.b16 %v2214
    %v2383 = vunpack.c.h.b16 %v2214
    %v2384 = vunpack.c.l.b16 %v2215
    %v2385 = vunpack.c.h.b16 %v2215
    %v2386 = vunpack.c.l.b16 %v2216
    %v2387 = vunpack.c.h.b16 %v2216
    %v2388 = vunpack.c.l.b16 %v2217
    %v2389 = vunpack.c.h.b16 %v2217
    %v2390 = vunpack.c.l.b16 %v2218
    %v2391 = vunpack.c.h.b16 %v2218
    %v2392 = vunpack.c.l.b16 %v2219
    %v2393 = vunpack.c.h.b16 %v2219
    %v2394 = vunpack.c.l.b16 %v2220
    %v2395 = vunpack.c.h.b16 %v2220
    %v2396 = vunpack.c.l.b16 %v2221
    %v2397 = vunpack.c.h.b16 %v2221
    %v2398 = vunpack.c.l.b16 %v2222
    %v2399 = vunpack.c.h.b16 %v2222
    %v2400 = vunpack.c.l.b16 %v2223
    %v2401 = vunpack.c.h.b16 %v2223
    %v2402 = vunpack.c.l.b16 %v2224
    %v2403 = vunpack.c.h.b16 %v2224
    %v2404 = vunpack.c.l.b16 %v2225
    %v2405 = vunpack.c.h.b16 %v2225
    %v2406 = vunpack.c.l.b16 %v2226
    %v2407 = vunpack.c.h.b16 %v2226
    %v2408 = vunpack.c.l.b16 %v2227
    %v2409 = vunpack.c.h.b16 %v2227
    %v2410 = vunpack.c.l.b16 %v2228
    %v2411 = vunpack.c.h.b16 %v2228
    %v2412 = vunpack.c.l.b16 %v2229
    %v2413 = vunpack.c.h.b16 %v2229
    %v2414 = vunpack.c.l.b16 %v2230
    %v2415 = vunpack.c.h.b16 %v2230
    %v2416 = vunpack.c.l.b16 %v2231
    %v2417 = vunpack.c.h.b16 %v2231
    %v2418 = vunpack.c.l.b16 %v2232
    %v2419 = vunpack.c.h.b16 %v2232
    %v2420 = vunpack.c.l.b16 %v2233
    %v2421 = vunpack.c.h.b16 %v2233
    %v2422 = vunpack.c.l.b16 %v2234
    %v2423 = vunpack.c.h.b16 %v2234
    %v2424 = vunpack.c.l.b16 %v2235
    %v2425 = vunpack.c.h.b16 %v2235
    %v2426 = vunpack.c.l.b16 %v2236
    %v2427 = vunpack.c.h.b16 %v2236
    %v2428 = vunpack.c.l.b16 %v2237
    %v2429 = vunpack.c.h.b16 %v2237
    %v2430 = vunpack.c.l.b16 %v2238
    %v2431 = vunpack.c.h.b16 %v2238
    %v2432 = vunpack.c.l.b16 %v2239
    %v2433 = vunpack.c.h.b16 %v2239
    %v2434 = vunpack.c.l.b16 %v2240
    %v2435 = vunpack.c.h.b16 %v2240
    %v2436 = vunpack.c.l.b16 %v2241
    %v2437 = vunpack.c.h.b16 %v2241
    %v2438 = vunpack.c.l.b16 %v2242
    %v2439 = vunpack.c.h.b16 %v2242
    %v2440 = vunpack.c.l.b16 %v2243
    %v2441 = vunpack.c.h.b16 %v2243
    %v2442 = vpack.c.b16 %v2316, %v2314
    %v2443 = vpack.c.b16 %v2317, %v2315
    %v2444 = vpack.c.b16 %v2320, %v2318
    %v2445 = vpack.c.b16 %v2321, %v2319
    %v2446 = vpack.c.b16 %v2324, %v2322
    %v2447 = vpack.c.b16 %v2325, %v2323
    %v2448 = vpack.c.b16 %v2328, %v2326
    %v2449 = vpack.c.b16 %v2329, %v2327
    %v2450 = vpack.c.b16 %v2332, %v2330
    %v2451 = vpack.c.b16 %v2333, %v2331
    %v2452 = vpack.c.b16 %v2336, %v2334
    %v2453 = vpack.c.b16 %v2337, %v2335
    %v2454 = vpack.c.b16 %v2340, %v2338
    %v2455 = vpack.c.b16 %v2341, %v2339
    %v2456 = vpack.c.b16 %v2344, %v2342
    %v2457 = vpack.c.b16 %v2345, %v2343
    %v2458 = vpack.c.b16 %v2348, %v2346
    %v2459 = vpack.c.b16 %v2349, %v2347
    %v2460 = vpack.c.b16 %v2352, %v2350
    %v2461 = vpack.c.b16 %v2353, %v2351
    %v2462 = vpack.c.b16 %v2356, %v2354
    %v2463 = vpack.c.b16 %v2357, %v2355
    %v2464 = vpack.c.b16 %v2360, %v2358
    %v2465 = vpack.c.b16 %v2361, %v2359
    %v2466 = vpack.c.b16 %v2364, %v2362
    %v2467 = vpack.c.b16 %v2365, %v2363
    %v2468 = vpack.c.b16 %v2368, %v2366
    %v2469 = vpack.c.b16 %v2369, %v2367
    %v2470 = vpack.c.b16 %v2372, %v2370
    %v2471 = vpack.c.b16 %v2373, %v2371
    %v2472 = vpack.c.b16 %v2376, %v2374
    %v2473 = vpack.c.b16 %v2377, %v2375
    %v2474 = vpack.c.b16 %v2380, %v2378
    %v2475 = vpack.c.b16 %v2381, %v2379
    %v2476 = vpack.c.b16 %v2384, %v2382
    %v2477 = vpack.c.b16 %v2385, %v2383
    %v2478 = vpack.c.b16 %v2388, %v2386
    %v2479 = vpack.c.b16 %v2389, %v2387
    %v2480 = vpack.c.b16 %v2392, %v2390
    %v2481 = vpack.c.b16 %v2393, %v2391
    %v2482 = vpack.c.b16 %v2396, %v2394
    %v2483 = vpack.c.b16 %v2397, %v2395
    %v2484 = vpack.c.b16 %v2400, %v2398
    %v2485 = vpack.c.b16 %v2401, %v2399
    %v2486 = vpack.c.b16 %v2404, %v2402
    %v2487 = vpack.c.b16 %v2405, %v2403
    %v2488 = vpack.c.b16 %v2408, %v2406
    %v2489 = vpack.c.b16 %v2409, %v2407
    %v2490 = vpack.c.b16 %v2412, %v2410
    %v2491 = vpack.c.b16 %v2413, %v2411
    %v2492 = vpack.c.b16 %v2416, %v2414
    %v2493 = vpack.c.b16 %v2417, %v2415
    %v2494 = vpack.c.b16 %v2420, %v2418
    %v2495 = vpack.c.b16 %v2421, %v2419
    %v2496 = vpack.c.b16 %v2424, %v2422
    %v2497 = vpack.c.b16 %v2425, %v2423
    %v2498 = vpack.c.b16 %v2428, %v2426
    %v2499 = vpack.c.b16 %v2429, %v2427
    %v2500 = vpack.c.b16 %v2432, %v2430
    %v2501 = vpack.c.b16 %v2433, %v2431
    %v2502 = vpack.c.b16 %v2436, %v2434
    %v2503 = vpack.c.b16 %v2437, %v2435
    %v2504 = vpack.c.b16 %v2440, %v2438
    %v2505 = vpack.c.b16 %v2441, %v2439
    %2570 = vmatpush.bf16.msra.mxu0 %v2456
    %2571 = vmatpush.bf16.msra.mxu0 %v2454
    %2572 = vmatpush.bf16.msra.mxu0 %v2452
    %2573 = vmatpush.bf16.msra.mxu0 %v2450
    %2574 = vmatpush.bf16.msra.mxu0 %v2448
    %2575 = vmatpush.bf16.msra.mxu0 %v2446
    %2576 = vmatpush.bf16.msra.mxu0 %v2444
    %2577 = vmatpush.bf16.msra.mxu0 %v2442
    %2578 = vmatmul.bf16.gmra.mxu0 %v2176
    %v2579 = vpop.f32.mrf.mxu0
    %v2580 = vadd.f32 %v2246, %v2579
    %v2581 = vpop.f32.mrf.mxu0
    %2582 = vdwg.mxu0
    %2583 = vmatpush.bf16.msra.mxu0 %v2472
    %2584 = vmatpush.bf16.msra.mxu0 %v2470
    %2585 = vmatpush.bf16.msra.mxu0 %v2468
    %2586 = vmatpush.bf16.msra.mxu0 %v2466
    %2587 = vmatpush.bf16.msra.mxu0 %v2464
    %2588 = vmatpush.bf16.msra.mxu0 %v2462
    %2589 = vmatpush.bf16.msra.mxu0 %v2460
    %2590 = vmatpush.bf16.msra.mxu0 %v2458
    %2591 = vmatmul.bf16.gmra.mxu0 %v2177
    %v2592 = vpop.f32.mrf.mxu0
    %v2593 = vadd.f32 %v2580, %v2592
    %v2594 = vpop.f32.mrf.mxu0
    %2595 = vdwg.mxu0
    %2596 = vmatpush.bf16.msra.mxu0 %v2488
    %2597 = vmatpush.bf16.msra.mxu0 %v2486
    %2598 = vmatpush.bf16.msra.mxu0 %v2484
    %2599 = vmatpush.bf16.msra.mxu0 %v2482
    %2600 = vmatpush.bf16.msra.mxu0 %v2480
    %2601 = vmatpush.bf16.msra.mxu0 %v2478
    %2602 = vmatpush.bf16.msra.mxu0 %v2476
    %2603 = vmatpush.bf16.msra.mxu0 %v2474
    %2604 = vmatmul.bf16.gmra.mxu0 %v2178
    %v2605 = vpop.f32.mrf.mxu0
    %v2606 = vadd.f32 %v2593, %v2605
    %v2607 = vpop.f32.mrf.mxu0
    %2608 = vdwg.mxu0
    %2609 = vmatpush.bf16.msra.mxu0 %v2504
    %2610 = vmatpush.bf16.msra.mxu0 %v2502
    %2611 = vmatpush.bf16.msra.mxu0 %v2500
    %2612 = vmatpush.bf16.msra.mxu0 %v2498
    %2613 = vmatpush.bf16.msra.mxu0 %v2496
    %2614 = vmatpush.bf16.msra.mxu0 %v2494
    %2615 = vmatpush.bf16.msra.mxu0 %v2492
    %2616 = vmatpush.bf16.msra.mxu0 %v2490
    %2617 = vmatmul.bf16.gmra.mxu0 %v2179
    %v2618 = vpop.f32.mrf.mxu0
    %v2619 = vadd.f32 %v2606, %v2618
    %v2620 = vpop.f32.mrf.mxu0
    %2621 = vdwg.mxu0
    %2622 = vmatpush.bf16.msra.mxu0 %v2457
    %2623 = vmatpush.bf16.msra.mxu0 %v2455
    %2624 = vmatpush.bf16.msra.mxu0 %v2453
    %2625 = vmatpush.bf16.msra.mxu0 %v2451
    %2626 = vmatpush.bf16.msra.mxu0 %v2449
    %2627 = vmatpush.bf16.msra.mxu0 %v2447
    %2628 = vmatpush.bf16.msra.mxu0 %v2445
    %2629 = vmatpush.bf16.msra.mxu0 %v2443
    %2630 = vmatmul.bf16.gmra.mxu0 %v2176
    %v2631 = vpop.f32.mrf.mxu0
    %v2632 = vadd.f32 %v2247, %v2631
    %v2633 = vpop.f32.mrf.mxu0
    %2634 = vdwg.mxu0
    %2635 = vmatpush.bf16.msra.mxu0 %v2473
    %2636 = vmatpush.bf16.msra.mxu0 %v2471
    %2637 = vmatpush.bf16.msra.mxu0 %v2469
    %2638 = vmatpush.bf16.msra.mxu0 %v2467
    %2639 = vmatpush.bf16.msra.mxu0 %v2465
    %2640 = vmatpush.bf16.msra.mxu0 %v2463
    %2641 = vmatpush.bf16.msra.mxu0 %v2461
    %2642 = vmatpush.bf16.msra.mxu0 %v2459
    %2643 = vmatmul.bf16.gmra.mxu0 %v2177
    %v2644 = vpop.f32.mrf.mxu0
    %v2645 = vadd.f32 %v2632, %v2644
    %v2646 = vpop.f32.mrf.mxu0
    %2647 = vdwg.mxu0
    %2648 = vmatpush.bf16.msra.mxu0 %v2489
    %2649 = vmatpush.bf16.msra.mxu0 %v2487
    %2650 = vmatpush.bf16.msra.mxu0 %v2485
    %2651 = vmatpush.bf16.msra.mxu0 %v2483
    %2652 = vmatpush.bf16.msra.mxu0 %v2481
    %2653 = vmatpush.bf16.msra.mxu0 %v2479
    %2654 = vmatpush.bf16.msra.mxu0 %v2477
    %2655 = vmatpush.bf16.msra.mxu0 %v2475
    %2656 = vmatmul.bf16.gmra.mxu0 %v2178
    %v2657 = vpop.f32.mrf.mxu0
    %v2658 = vadd.f32 %v2645, %v2657
    %v2659 = vpop.f32.mrf.mxu0
    %2660 = vdwg.mxu0
    %2661 = vmatpush.bf16.msra.mxu0 %v2505
    %2662 = vmatpush.bf16.msra.mxu0 %v2503
    %2663 = vmatpush.bf16.msra.mxu0 %v2501
    %2664 = vmatpush.bf16.msra.mxu0 %v2499
    %2665 = vmatpush.bf16.msra.mxu0 %v2497
    %2666 = vmatpush.bf16.msra.mxu0 %v2495
    %2667 = vmatpush.bf16.msra.mxu0 %v2493
    %2668 = vmatpush.bf16.msra.mxu0 %v2491
    %2669 = vmatmul.bf16.gmra.mxu0 %v2179
    %v2670 = vpop.f32.mrf.mxu0
    %v2671 = vadd.f32 %v2658, %v2670
    %v2672 = vpop.f32.mrf.mxu0
    %2673 = vdwg.mxu0
    %v2674 = vpack.c.bf16 %v2619, %v2619
    %v2675 = vpack.c.bf16 %v2671, %v2671
    %v2676 = vld [vmem:[#allocation8] sm:$0xf]
    %v2677 = vld [vmem:[#allocation8 + $0x4] sm:$0xf]
    %v2678 = vld [vmem:[#allocation8 + $0x8] sm:$0xf]
    %v2679 = vld [vmem:[#allocation8 + $0xc] sm:$0xf]
    %v2680 = vld [vmem:[#allocation8 + $0x10] sm:$0xf]
    %v2681 = vld [vmem:[#allocation8 + $0x14] sm:$0xf]
    %v2682 = vld [vmem:[#allocation8 + $0x18] sm:$0xf]
    %v2683 = vld [vmem:[#allocation8 + $0x1c] sm:$0xf]
    %v2684 = vld [vmem:[#allocation8 + $0x20] sm:$0xf]
    %v2685 = vld [vmem:[#allocation8 + $0x24] sm:$0xf]
    %v2686 = vld [vmem:[#allocation8 + $0x28] sm:$0xf]
    %v2687 = vld [vmem:[#allocation8 + $0x2c] sm:$0xf]
    %v2688 = vld [vmem:[#allocation8 + $0x30] sm:$0xf]
    %v2689 = vld [vmem:[#allocation8 + $0x34] sm:$0xf]
    %v2690 = vld [vmem:[#allocation8 + $0x38] sm:$0xf]
    %v2691 = vld [vmem:[#allocation8 + $0x3c] sm:$0xf]
    %v2692 = vld [vmem:[#allocation8 + $0x40] sm:$0xf]
    %v2693 = vld [vmem:[#allocation8 + $0x44] sm:$0xf]
    %v2694 = vld [vmem:[#allocation8 + $0x48] sm:$0xf]
    %v2695 = vld [vmem:[#allocation8 + $0x4c] sm:$0xf]
    %v2696 = vld [vmem:[#allocation8 + $0x50] sm:$0xf]
    %v2697 = vld [vmem:[#allocation8 + $0x54] sm:$0xf]
    %v2698 = vld [vmem:[#allocation8 + $0x58] sm:$0xf]
    %v2699 = vld [vmem:[#allocation8 + $0x5c] sm:$0xf]
    %v2700 = vld [vmem:[#allocation8 + $0x60] sm:$0xf]
    %v2701 = vld [vmem:[#allocation8 + $0x64] sm:$0xf]
    %v2702 = vld [vmem:[#allocation8 + $0x68] sm:$0xf]
    %v2703 = vld [vmem:[#allocation8 + $0x6c] sm:$0xf]
    %v2704 = vld [vmem:[#allocation8 + $0x70] sm:$0xf]
    %v2705 = vld [vmem:[#allocation8 + $0x74] sm:$0xf]
    %v2706 = vld [vmem:[#allocation8 + $0x78] sm:$0xf]
    %v2707 = vld [vmem:[#allocation8 + $0x7c] sm:$0xf]
    %v2708 = vld [vmem:[%s8] sm:$0x1]
    %v2710 = vperm.slane %v2708, 0
    %v2744 = vunpack.c.l.b16 %v2676
    %v2745 = vunpack.c.l.b16 %v2677
    %v2746 = vunpack.c.l.b16 %v2678
    %v2747 = vunpack.c.l.b16 %v2679
    %v2748 = vunpack.c.l.b16 %v2680
    %v2749 = vunpack.c.l.b16 %v2681
    %v2750 = vunpack.c.l.b16 %v2682
    %v2751 = vunpack.c.l.b16 %v2683
    %v2752 = vunpack.c.l.b16 %v2684
    %v2753 = vunpack.c.l.b16 %v2685
    %v2754 = vunpack.c.l.b16 %v2686
    %v2755 = vunpack.c.l.b16 %v2687
    %v2756 = vunpack.c.l.b16 %v2688
    %v2757 = vunpack.c.l.b16 %v2689
    %v2758 = vunpack.c.l.b16 %v2690
    %v2759 = vunpack.c.l.b16 %v2691
    %v2760 = vunpack.c.l.b16 %v2692
    %v2761 = vunpack.c.l.b16 %v2693
    %v2762 = vunpack.c.l.b16 %v2694
    %v2763 = vunpack.c.l.b16 %v2695
    %v2764 = vunpack.c.l.b16 %v2696
    %v2765 = vunpack.c.l.b16 %v2697
    %v2766 = vunpack.c.l.b16 %v2698
    %v2767 = vunpack.c.l.b16 %v2699
    %v2768 = vunpack.c.l.b16 %v2700
    %v2769 = vunpack.c.l.b16 %v2701
    %v2770 = vunpack.c.l.b16 %v2702
    %v2771 = vunpack.c.l.b16 %v2703
    %v2772 = vunpack.c.l.b16 %v2704
    %v2773 = vunpack.c.l.b16 %v2705
    %v2774 = vunpack.c.l.b16 %v2706
    %v2775 = vunpack.c.l.b16 %v2707
    %v2776 = vpack.c.b16 %v2745, %v2744
    %v2777 = vpack.c.b16 %v2747, %v2746
    %v2778 = vpack.c.b16 %v2749, %v2748
    %v2779 = vpack.c.b16 %v2751, %v2750
    %v2780 = vpack.c.b16 %v2753, %v2752
    %v2781 = vpack.c.b16 %v2755, %v2754
    %v2782 = vpack.c.b16 %v2757, %v2756
    %v2783 = vpack.c.b16 %v2759, %v2758
    %v2784 = vpack.c.b16 %v2761, %v2760
    %v2785 = vpack.c.b16 %v2763, %v2762
    %v2786 = vpack.c.b16 %v2765, %v2764
    %v2787 = vpack.c.b16 %v2767, %v2766
    %v2788 = vpack.c.b16 %v2769, %v2768
    %v2789 = vpack.c.b16 %v2771, %v2770
    %v2790 = vpack.c.b16 %v2773, %v2772
    %v2791 = vpack.c.b16 %v2775, %v2774
    %2808 = vmatpush.bf16.msra.mxu0 %v2783
    %2809 = vmatpush.bf16.msra.mxu0 %v2782
    %2810 = vmatpush.bf16.msra.mxu0 %v2781
    %2811 = vmatpush.bf16.msra.mxu0 %v2780
    %2812 = vmatpush.bf16.msra.mxu0 %v2779
    %2813 = vmatpush.bf16.msra.mxu0 %v2778
    %2814 = vmatpush.bf16.msra.mxu0 %v2777
    %2815 = vmatpush.bf16.msra.mxu0 %v2776
    %2816 = vmatmul.bf16.gmra.mxu0 %v2674
    %v2817 = vpop.f32.mrf.mxu0
    %v2818 = vadd.f32 %v2710, %v2817
    %v2819 = vpop.f32.mrf.mxu0
    %2820 = vdwg.mxu0
    %2821 = vmatpush.bf16.msra.mxu0 %v2791
    %2822 = vmatpush.bf16.msra.mxu0 %v2790
    %2823 = vmatpush.bf16.msra.mxu0 %v2789
    %2824 = vmatpush.bf16.msra.mxu0 %v2788
    %2825 = vmatpush.bf16.msra.mxu0 %v2787
    %2826 = vmatpush.bf16.msra.mxu0 %v2786
    %2827 = vmatpush.bf16.msra.mxu0 %v2785
    %2828 = vmatpush.bf16.msra.mxu0 %v2784
    %2829 = vmatmul.bf16.gmra.mxu0 %v2675
    %v2830 = vpop.f32.mrf.mxu0
    %v2831 = vadd.f32 %v2818, %v2830
    %v2832 = vpop.f32.mrf.mxu0
    %2833 = vdwg.mxu0
    %v2834 = vsub.f32 0.0, %v2831
    %v2835 = vmul.f32 %v2834, 1.442695
    %v2836 = vpow.pop %v2835
    %v2837 = vadd.f32 %v2836, 1.0
    %v2838 = vrcp.pop %v2837
    %2839 = vst [vmem:[#allocation10] sm:$0xff] %v2838
    // Predicated region
    $region54: #{tpu_custom_call.1} parent=1 // pred_check
      _
    $region55: #{tpu_custom_call.1} parent=1 // pred_check_branch
      %2841 = sbr.rel (0) target = $region57
    $region56: #{tpu_custom_call.1} parent=1 // pred_region
      %2843 = vsyncadd [#allocation4], 0
      %s2845 = sshll.u32 [#allocation10], 4
      %s2846 = int_to_ptr.vmem [resolvable:$true] %s2845
      %s2847 = sshll.u32 %s9, 4
      %s2848 = int_to_ptr.hbm [resolvable:$true] %s2847
      %2850 = dma.vmem_to_hbm [thread:$0]  %s2846, 128, %s2848, [#allocation4]
    $region57: #{tpu_custom_call.1} parent=1 // pred_fallthru
      _
    // Predicated region
    $region58: #{tpu_custom_call.1} parent=1 // pred_check
      _
    $region59: #{tpu_custom_call.1} parent=1 // pred_check_branch
      %2852 = sbr.rel (0) target = $region61
    $region60: #{tpu_custom_call.1} parent=1 // pred_region
      %2854 = dma.done [#allocation4], 128
    $region61: #{tpu_custom_call.1} parent=1 // pred_fallthru
      _
    %2855 = vsyncpa [#allocation3], 1
    %2856 = vsyncpa [#allocation6], 1
    %2857 = vsyncpa [#allocation9], 1
    %2858 = vsyncpa [#allocation4], 1

</llo_original>
